<compile_context>
chip_gen: v7x
topology: tpu7x:2x2x1
jax: 0.10.0
libtpu: 0.0.40
codegen_flags: <defaults>
</compile_context>

<pallas_src>
import functools

import jax
import jax.numpy as jnp
from jax.experimental import pallas as pl
from jax.experimental.pallas import tpu as pltpu


def _round_up(x, m):
    return (x + m - 1) // m * m


def _lstm_kernel(x_ref, wih_ref, whh_ref, b_ref, wlin_ref, blin_ref,
                 out_ref, xg_scr, h_scr, c_scr,
                 *, T, Tc, Bp, Hp, unroll, needs_mask):
    chunk = pl.program_id(0)

    # ---- init carried state on the first time-chunk ----
    @pl.when(chunk == 0)
    def _():
        h_scr[...] = jnp.zeros_like(h_scr)
        c_scr[...] = jnp.zeros_like(c_scr)

    # ---- 1) chunk input projection: one MXU matmul for all Tc timesteps ----
    # bf16 operands, f32 accumulation; gate pre-activations kept in f32.
    xg_scr[...] = (jnp.dot(x_ref[...], wih_ref[...],
                           preferred_element_type=jnp.float32)
                   + b_ref[...])

    whh = whh_ref[...]            # bf16 (Hp, 4Hp), VMEM-resident across the loop

    # ---- 2) recurrence over this chunk (serial critical path) ----
    def step(t, carry):
        h, c = carry
        row = pl.multiple_of(t * Bp, Bp)
        gates = (xg_scr[pl.ds(row, Bp), :]
                 + jnp.dot(h.astype(jnp.bfloat16), whh,
                           preferred_element_type=jnp.float32))
        # Hp is a multiple of 128 -> every gate slice is vreg-lane aligned.
        pre_i = gates[:, 0 * Hp:1 * Hp]
        pre_f = gates[:, 1 * Hp:2 * Hp]
        pre_g = gates[:, 2 * Hp:3 * Hp]
        pre_o = gates[:, 3 * Hp:4 * Hp]
        # sigmoid(x) = 0.5*tanh(0.5*x) + 0.5  (1 EUP push + 1 VPU fma per gate)
        i_g = 0.5 * jnp.tanh(0.5 * pre_i) + 0.5
        f_g = 0.5 * jnp.tanh(0.5 * pre_f) + 0.5
        g_g = jnp.tanh(pre_g)
        o_g = 0.5 * jnp.tanh(0.5 * pre_o) + 0.5
        c_new = f_g * c + i_g * g_g
        h_new = o_g * jnp.tanh(c_new)
        if needs_mask:  # only traced when T % Tc != 0 (padded tail timesteps)
            valid = (chunk * Tc + t) < T
            h_new = jnp.where(valid, h_new, h)
            c_new = jnp.where(valid, c_new, c)
        return h_new, c_new

    h, c = jax.lax.fori_loop(0, Tc, step, (h_scr[...], c_scr[...]),
                             unroll=unroll)
    h_scr[...] = h
    c_scr[...] = c

    # ---- 3) Linear head on final hidden state; lane-dense (Bp, Fp) store ----
    @pl.when(chunk == pl.num_programs(0) - 1)
    def _():
        out_ref[...] = (jnp.dot(h.astype(jnp.bfloat16), wlin_ref[...],
                                preferred_element_type=jnp.float32)
                        + blin_ref[...])


def lstm_forward(x, w_ih, w_hh, b_ih, b_hh, w_lin, b_lin, *, tc_max=256):
    """x: (B, T, D) batch_first (PyTorch convention).

    w_ih: (4H, D), w_hh: (4H, H), b_ih/b_hh: (4H,)   -- PyTorch nn.LSTM shapes
    w_lin: (F, H), b_lin: (F,)                       -- PyTorch nn.Linear shapes
    returns: (B, F) float32
    """
    B, T, D = x.shape
    H = w_hh.shape[1]
    F = w_lin.shape[0]

    Bp = _round_up(B, 8)        # sublane-dense batch
    Dp = _round_up(D, 128)      # lane-dense input dim
    Hp = _round_up(H, 128)      # lane-dense hidden dim (gate slices align)
    Fp = _round_up(F, 128)      # lane-dense output dim (unmasked vst)
    G = 4 * Hp
    f32 = jnp.float32
    bf16 = jnp.bfloat16

    Tc = min(T, tc_max)                 # time-chunk length (bounds VMEM at O(Tc))
    Tp = _round_up(T, Tc)
    n_chunks = Tp // Tc
    needs_mask = (Tp != T)
    unroll = Tc if Tc <= 16 else 8

    # ---- glue / layout (plain JAX, fused under jit): time-major, padded ----
    x_tm = jnp.transpose(x, (1, 0, 2)).astype(f32)                      # (T, B, D)
    x_p = jnp.zeros((Tp, Bp, Dp), f32).at[:T, :B, :D].set(x_tm)
    x2d = x_p.reshape(Tp * Bp, Dp).astype(bf16)                         # (Tp*Bp, Dp)

    # Gate-blocked, zero-padded weights: gate k occupies columns [k*Hp, k*Hp+H).
    wih_g = jnp.transpose(w_ih).astype(f32).reshape(D, 4, H)
    wih_p = (jnp.zeros((Dp, 4, Hp), f32).at[:D, :, :H].set(wih_g)
             .reshape(Dp, G).astype(bf16))

    whh_g = jnp.transpose(w_hh).astype(f32).reshape(H, 4, H)
    whh_p = (jnp.zeros((Hp, 4, Hp), f32).at[:H, :, :H].set(whh_g)
             .reshape(Hp, G).astype(bf16))

    bias_g = (b_ih + b_hh).astype(f32).reshape(4, H)
    bias_p = jnp.zeros((4, Hp), f32).at[:, :H].set(bias_g).reshape(1, G)

    wlin_p = (jnp.zeros((Hp, Fp), f32).at[:H, :F]
              .set(jnp.transpose(w_lin).astype(f32)).astype(bf16))
    blin_p = jnp.zeros((1, Fp), f32).at[:, :F].set(
        b_lin.astype(f32).reshape(1, F))

    kernel = functools.partial(_lstm_kernel, T=T, Tc=Tc, Bp=Bp, Hp=Hp,
                               unroll=unroll, needs_mask=needs_mask)

    # ---- VMEM budget: size the scoped limit to the actual buffers ----
    est = (Tc * Bp * Dp * 2 * 2                       # x chunk (bf16, dbl-buf)
           + (Dp * G + Hp * G + Hp * Fp) * 2 * 2      # bf16 weights (dbl-buf)
           + (G + Fp) * 4 * 2                         # f32 biases (dbl-buf)
           + Tc * Bp * G * 4                          # xg scratch (f32)
           + 2 * Bp * Hp * 4                          # carried h/c scratch
           + Bp * Fp * 4 * 2)                         # output (dbl-buf)
    vmem_limit = int(min(max(2 * est + (8 << 20), 16 << 20), 48 << 20))

    grid_spec = pltpu.PrefetchScalarGridSpec(
        num_scalar_prefetch=0,
        grid=(n_chunks,),                               # time chunks (serial)
        in_specs=[
            pl.BlockSpec((Tc * Bp, Dp), lambda c: (c, 0)),  # x chunk (pipelined)
            pl.BlockSpec((Dp, G), lambda c: (0, 0)),        # W_ih^T (gate-blocked)
            pl.BlockSpec((Hp, G), lambda c: (0, 0)),        # W_hh^T (gate-blocked)
            pl.BlockSpec((1, G), lambda c: (0, 0)),         # fused bias
            pl.BlockSpec((Hp, Fp), lambda c: (0, 0)),       # W_lin^T
            pl.BlockSpec((1, Fp), lambda c: (0, 0)),        # b_lin
        ],
        out_specs=pl.BlockSpec((Bp, Fp), lambda c: (0, 0)),
        scratch_shapes=[
            pltpu.VMEM((Tc * Bp, G), jnp.float32),          # chunk gate pre-acts
            pltpu.VMEM((Bp, Hp), jnp.float32),              # carried h
            pltpu.VMEM((Bp, Hp), jnp.float32),              # carried c
        ],
    )

    out_p = pl.pallas_call(
        kernel,
        out_shape=jax.ShapeDtypeStruct((Bp, Fp), jnp.float32),
        grid_spec=grid_spec,
        compiler_params=pltpu.CompilerParams(
            dimension_semantics=("arbitrary",),
            vmem_limit_bytes=vmem_limit,
        ),
    )(x2d, wih_p, whh_p, bias_p, wlin_p, blin_p)

    return out_p[:B, :F]


def lstm_ref(x, w_ih, w_hh, b_ih, b_hh, w_lin, b_lin):
    """Pure-JAX f32 reference matching nn.LSTM (1 layer, batch_first) + Linear."""
    B, T, D = x.shape
    H = w_hh.shape[1]
    h0 = jnp.zeros((B, H), jnp.float32)
    c0 = jnp.zeros((B, H), jnp.float32)

    def step(carry, x_t):
        h, c = carry
        gates = x_t @ w_ih.T + b_ih + h @ w_hh.T + b_hh
        i, f, g, o = jnp.split(gates, 4, axis=-1)
        i = jax.nn.sigmoid(i)
        f = jax.nn.sigmoid(f)
        g = jnp.tanh(g)
        o = jax.nn.sigmoid(o)
        c = f * c + i * g
        h = o * jnp.tanh(c)
        return (h, c), None

    (h_n, _), _ = jax.lax.scan(step, (h0, c0), jnp.transpose(x, (1, 0, 2)))
    return h_n @ w_lin.T + b_lin


if __name__ == "__main__":
    # Module hyperparams implied by the forward pass:
    #   num_layers = 1 (h_n.squeeze(0) -> (B, H)); hidden_size == input_size
    #   (Linear takes in_features=input_size and is applied to h_n).
    B, T = 2, 8
    input_size = 32
    hidden_size = 32
    out_features = 16

    key = jax.random.PRNGKey(0)
    k_x, k1, k2, k3, k4, k5, k6 = jax.random.split(key, 7)

    x = jax.random.normal(k_x, (B, T, input_size), dtype=jnp.float32)

    u = lambda k, shp, lo=-0.1, hi=0.1: jax.random.uniform(k, shp, jnp.float32, lo, hi)
    w_ih = u(k1, (4 * hidden_size, input_size))
    w_hh = u(k2, (4 * hidden_size, hidden_size))
    b_ih = u(k3, (4 * hidden_size,))
    b_hh = u(k4, (4 * hidden_size,))
    w_lin = u(k5, (out_features, hidden_size))
    b_lin = u(k6, (out_features,))

    fwd = jax.jit(lstm_forward)   # fuses the padding/transpose glue with the kernel
    out = fwd(x, w_ih, w_hh, b_ih, b_hh, w_lin, b_lin)
    out = jax.block_until_ready(out)

    ref = lstm_ref(x, w_ih, w_hh, b_ih, b_hh, w_lin, b_lin)
    assert out.shape == (B, out_features)
    # bf16 MXU operands (f32 accumulation) -> slightly looser tolerance vs f32 ref.
    assert jnp.allclose(out, ref, atol=2e-2, rtol=2e-2), "mismatch vs reference"

    print("KERNEL_OK")
</pallas_src>

<mosaic_0001>
module attributes {stable_mosaic.version = 11 : i64} {
  func.func @_lstm_kernel(%arg0: i32, %arg1: memref<64x128xbf16, #tpu.memory_space<vmem>>, %arg2: memref<128x512xbf16, #tpu.memory_space<vmem>>, %arg3: memref<128x512xbf16, #tpu.memory_space<vmem>>, %arg4: memref<1x512xf32, #tpu.memory_space<vmem>>, %arg5: memref<128x128xbf16, #tpu.memory_space<vmem>>, %arg6: memref<1x128xf32, #tpu.memory_space<vmem>>, %arg7: memref<8x128xf32, #tpu.memory_space<vmem>>, %arg8: memref<64x512xf32, #tpu.memory_space<vmem>>, %arg9: memref<8x128xf32, #tpu.memory_space<vmem>>, %arg10: memref<8x128xf32, #tpu.memory_space<vmem>>) attributes {dimension_semantics = [#tpu.dimension_semantics<arbitrary>], iteration_bounds = array<i64: 1>, scalar_prefetch = 0 : i64, scratch_operands = 3 : i64, tpu.core_type = #tpu.core_type<tc>, window_params = [{transform_indices = @transform_0, window_bounds = array<i64: 64, 128>}, {pipeline_mode = #tpu.pipeline_mode<synchronous>, transform_indices = @transform_1, window_bounds = array<i64: 128, 512>}, {pipeline_mode = #tpu.pipeline_mode<synchronous>, transform_indices = @transform_2, window_bounds = array<i64: 128, 512>}, {pipeline_mode = #tpu.pipeline_mode<synchronous>, transform_indices = @transform_3, window_bounds = array<i64: 1, 512>}, {pipeline_mode = #tpu.pipeline_mode<synchronous>, transform_indices = @transform_4, window_bounds = array<i64: 128, 128>}, {pipeline_mode = #tpu.pipeline_mode<synchronous>, transform_indices = @transform_5, window_bounds = array<i64: 1, 128>}, {pipeline_mode = #tpu.pipeline_mode<synchronous>, transform_indices = @transform_6, window_bounds = array<i64: 8, 128>}]} {
    %c0_i32 = arith.constant 0 : i32
    %0 = arith.cmpi eq, %arg0, %c0_i32 : i32
    %1 = arith.extui %0 : i1 to i32
    %c0_i32_0 = arith.constant 0 : i32
    %2 = arith.cmpi ne, %1, %c0_i32_0 : i32
    scf.if %2 {
      %cst_117 = arith.constant 0.000000e+00 : f32
      %322 = vector.broadcast %cst_117 : f32 to vector<8x128xf32>
      %c0_118 = arith.constant 0 : index
      %c0_119 = arith.constant 0 : index
      %323 = vector.load %arg9[%c0_118, %c0_119] : memref<8x128xf32, #tpu.memory_space<vmem>>, vector<8x128xf32>
      tpu.vector_store %arg9[%c0_118, %c0_119], %322 {strides = array<i32>} : memref<8x128xf32, #tpu.memory_space<vmem>>, vector<8x128xf32>,
      %cst_120 = arith.constant 0.000000e+00 : f32
      %324 = vector.broadcast %cst_120 : f32 to vector<8x128xf32>
      %c0_121 = arith.constant 0 : index
      %c0_122 = arith.constant 0 : index
      %325 = vector.load %arg10[%c0_121, %c0_122] : memref<8x128xf32, #tpu.memory_space<vmem>>, vector<8x128xf32>
      tpu.vector_store %arg10[%c0_121, %c0_122], %324 {strides = array<i32>} : memref<8x128xf32, #tpu.memory_space<vmem>>, vector<8x128xf32>,
    } else {
    }
    %c0 = arith.constant 0 : index
    %c0_1 = arith.constant 0 : index
    %3 = vector.load %arg1[%c0, %c0_1] : memref<64x128xbf16, #tpu.memory_space<vmem>>, vector<64x128xbf16>
    %c0_2 = arith.constant 0 : index
    %c0_3 = arith.constant 0 : index
    %4 = vector.load %arg2[%c0_2, %c0_3] : memref<128x512xbf16, #tpu.memory_space<vmem>>, vector<128x512xbf16>
    %cst = arith.constant dense<0.000000e+00> : vector<64x512xf32>
    %5 = tpu.matmul %3, %4, %cst {dimension_numbers = #tpu.dot_dimension_numbers<[1], [0], [0], [1], [0, 0, 1, 1], [], []>} : vector<64x128xbf16>, vector<128x512xbf16>, vector<64x512xf32> -> vector<64x512xf32>
    %c0_4 = arith.constant 0 : index
    %c0_5 = arith.constant 0 : index
    %6 = vector.load %arg4[%c0_4, %c0_5] : memref<1x512xf32, #tpu.memory_space<vmem>>, vector<1x512xf32>
    %7 = vector.broadcast %6 : vector<1x512xf32> to vector<64x512xf32>
    %8 = arith.addf %5, %7 : vector<64x512xf32>
    %c0_6 = arith.constant 0 : index
    %c0_7 = arith.constant 0 : index
    %9 = vector.load %arg8[%c0_6, %c0_7] : memref<64x512xf32, #tpu.memory_space<vmem>>, vector<64x512xf32>
    tpu.vector_store %arg8[%c0_6, %c0_7], %8 {strides = array<i32>} : memref<64x512xf32, #tpu.memory_space<vmem>>, vector<64x512xf32>,
    %c0_8 = arith.constant 0 : index
    %c0_9 = arith.constant 0 : index
    %10 = vector.load %arg3[%c0_8, %c0_9] : memref<128x512xbf16, #tpu.memory_space<vmem>>, vector<128x512xbf16>
    %c0_10 = arith.constant 0 : index
    %c0_11 = arith.constant 0 : index
    %11 = vector.load %arg9[%c0_10, %c0_11] : memref<8x128xf32, #tpu.memory_space<vmem>>, vector<8x128xf32>
    %c0_12 = arith.constant 0 : index
    %c0_13 = arith.constant 0 : index
    %12 = vector.load %arg10[%c0_12, %c0_13] : memref<8x128xf32, #tpu.memory_space<vmem>>, vector<8x128xf32>
    %c0_i32_14 = arith.constant 0 : i32
    %c8_i32 = arith.constant 8 : i32
    %13 = arith.muli %c0_i32_14, %c8_i32 : i32
    %14 = tpu.assume_multiple %13, 8 : i32
    %15 = arith.index_cast %14 : i32 to index
    %c0_15 = arith.constant 0 : index
    %16 = vector.load %arg8[%15, %c0_15] : memref<64x512xf32, #tpu.memory_space<vmem>>, vector<8x512xf32>
    %17 = arith.truncf %11 : vector<8x128xf32> to vector<8x128xbf16>
    %cst_16 = arith.constant dense<0.000000e+00> : vector<8x512xf32>
    %18 = tpu.matmul %17, %10, %cst_16 {dimension_numbers = #tpu.dot_dimension_numbers<[1], [0], [0], [1], [0, 0, 1, 1], [], []>} : vector<8x128xbf16>, vector<128x512xbf16>, vector<8x512xf32> -> vector<8x512xf32>
    %19 = arith.addf %16, %18 : vector<8x512xf32>
    %20 = vector.extract_strided_slice %19 {offsets = [0, 0], sizes = [8, 128], strides = [1, 1]} : vector<8x512xf32> to vector<8x128xf32>
    %21 = vector.extract_strided_slice %19 {offsets = [0, 128], sizes = [8, 128], strides = [1, 1]} : vector<8x512xf32> to vector<8x128xf32>
    %22 = vector.extract_strided_slice %19 {offsets = [0, 256], sizes = [8, 128], strides = [1, 1]} : vector<8x512xf32> to vector<8x128xf32>
    %23 = vector.extract_strided_slice %19 {offsets = [0, 384], sizes = [8, 128], strides = [1, 1]} : vector<8x512xf32> to vector<8x128xf32>
    %cst_17 = arith.constant 5.000000e-01 : f32
    %24 = vector.broadcast %cst_17 : f32 to vector<8x128xf32>
    %25 = arith.mulf %24, %20 : vector<8x128xf32>
    %26 = math.tanh %25 : vector<8x128xf32>
    %cst_18 = arith.constant 5.000000e-01 : f32
    %27 = vector.broadcast %cst_18 : f32 to vector<8x128xf32>
    %28 = arith.mulf %27, %26 : vector<8x128xf32>
    %cst_19 = arith.constant 5.000000e-01 : f32
    %29 = vector.broadcast %cst_19 : f32 to vector<8x128xf32>
    %30 = arith.addf %28, %29 : vector<8x128xf32>
    %cst_20 = arith.constant 5.000000e-01 : f32
    %31 = vector.broadcast %cst_20 : f32 to vector<8x128xf32>
    %32 = arith.mulf %31, %21 : vector<8x128xf32>
    %33 = math.tanh %32 : vector<8x128xf32>
    %cst_21 = arith.constant 5.000000e-01 : f32
    %34 = vector.broadcast %cst_21 : f32 to vector<8x128xf32>
    %35 = arith.mulf %34, %33 : vector<8x128xf32>
    %cst_22 = arith.constant 5.000000e-01 : f32
    %36 = vector.broadcast %cst_22 : f32 to vector<8x128xf32>
    %37 = arith.addf %35, %36 : vector<8x128xf32>
    %38 = math.tanh %22 : vector<8x128xf32>
    %cst_23 = arith.constant 5.000000e-01 : f32
    %39 = vector.broadcast %cst_23 : f32 to vector<8x128xf32>
    %40 = arith.mulf %39, %23 : vector<8x128xf32>
    %41 = math.tanh %40 : vector<8x128xf32>
    %cst_24 = arith.constant 5.000000e-01 : f32
    %42 = vector.broadcast %cst_24 : f32 to vector<8x128xf32>
    %43 = arith.mulf %42, %41 : vector<8x128xf32>
    %cst_25 = arith.constant 5.000000e-01 : f32
    %44 = vector.broadcast %cst_25 : f32 to vector<8x128xf32>
    %45 = arith.addf %43, %44 : vector<8x128xf32>
    %46 = arith.mulf %37, %12 : vector<8x128xf32>
    %47 = arith.mulf %30, %38 : vector<8x128xf32>
    %48 = arith.addf %46, %47 : vector<8x128xf32>
    %49 = math.tanh %48 : vector<8x128xf32>
    %50 = arith.mulf %45, %49 : vector<8x128xf32>
    %c1_i32 = arith.constant 1 : i32
    %c8_i32_26 = arith.constant 8 : i32
    %51 = arith.muli %c1_i32, %c8_i32_26 : i32
    %52 = tpu.assume_multiple %51, 8 : i32
    %53 = arith.index_cast %52 : i32 to index
    %c0_27 = arith.constant 0 : index
    %54 = vector.load %arg8[%53, %c0_27] : memref<64x512xf32, #tpu.memory_space<vmem>>, vector<8x512xf32>
    %55 = arith.truncf %50 : vector<8x128xf32> to vector<8x128xbf16>
    %cst_28 = arith.constant dense<0.000000e+00> : vector<8x512xf32>
    %56 = tpu.matmul %55, %10, %cst_28 {dimension_numbers = #tpu.dot_dimension_numbers<[1], [0], [0], [1], [0, 0, 1, 1], [], []>} : vector<8x128xbf16>, vector<128x512xbf16>, vector<8x512xf32> -> vector<8x512xf32>
    %57 = arith.addf %54, %56 : vector<8x512xf32>
    %58 = vector.extract_strided_slice %57 {offsets = [0, 0], sizes = [8, 128], strides = [1, 1]} : vector<8x512xf32> to vector<8x128xf32>
    %59 = vector.extract_strided_slice %57 {offsets = [0, 128], sizes = [8, 128], strides = [1, 1]} : vector<8x512xf32> to vector<8x128xf32>
    %60 = vector.extract_strided_slice %57 {offsets = [0, 256], sizes = [8, 128], strides = [1, 1]} : vector<8x512xf32> to vector<8x128xf32>
    %61 = vector.extract_strided_slice %57 {offsets = [0, 384], sizes = [8, 128], strides = [1, 1]} : vector<8x512xf32> to vector<8x128xf32>
    %cst_29 = arith.constant 5.000000e-01 : f32
    %62 = vector.broadcast %cst_29 : f32 to vector<8x128xf32>
    %63 = arith.mulf %62, %58 : vector<8x128xf32>
    %64 = math.tanh %63 : vector<8x128xf32>
    %cst_30 = arith.constant 5.000000e-01 : f32
    %65 = vector.broadcast %cst_30 : f32 to vector<8x128xf32>
    %66 = arith.mulf %65, %64 : vector<8x128xf32>
    %cst_31 = arith.constant 5.000000e-01 : f32
    %67 = vector.broadcast %cst_31 : f32 to vector<8x128xf32>
    %68 = arith.addf %66, %67 : vector<8x128xf32>
    %cst_32 = arith.constant 5.000000e-01 : f32
    %69 = vector.broadcast %cst_32 : f32 to vector<8x128xf32>
    %70 = arith.mulf %69, %59 : vector<8x128xf32>
    %71 = math.tanh %70 : vector<8x128xf32>
    %cst_33 = arith.constant 5.000000e-01 : f32
    %72 = vector.broadcast %cst_33 : f32 to vector<8x128xf32>
    %73 = arith.mulf %72, %71 : vector<8x128xf32>
    %cst_34 = arith.constant 5.000000e-01 : f32
    %74 = vector.broadcast %cst_34 : f32 to vector<8x128xf32>
    %75 = arith.addf %73, %74 : vector<8x128xf32>
    %76 = math.tanh %60 : vector<8x128xf32>
    %cst_35 = arith.constant 5.000000e-01 : f32
    %77 = vector.broadcast %cst_35 : f32 to vector<8x128xf32>
    %78 = arith.mulf %77, %61 : vector<8x128xf32>
    %79 = math.tanh %78 : vector<8x128xf32>
    %cst_36 = arith.constant 5.000000e-01 : f32
    %80 = vector.broadcast %cst_36 : f32 to vector<8x128xf32>
    %81 = arith.mulf %80, %79 : vector<8x128xf32>
    %cst_37 = arith.constant 5.000000e-01 : f32
    %82 = vector.broadcast %cst_37 : f32 to vector<8x128xf32>
    %83 = arith.addf %81, %82 : vector<8x128xf32>
    %84 = arith.mulf %75, %48 : vector<8x128xf32>
    %85 = arith.mulf %68, %76 : vector<8x128xf32>
    %86 = arith.addf %84, %85 : vector<8x128xf32>
    %87 = math.tanh %86 : vector<8x128xf32>
    %88 = arith.mulf %83, %87 : vector<8x128xf32>
    %c2_i32 = arith.constant 2 : i32
    %c8_i32_38 = arith.constant 8 : i32
    %89 = arith.muli %c2_i32, %c8_i32_38 : i32
    %90 = tpu.assume_multiple %89, 8 : i32
    %91 = arith.index_cast %90 : i32 to index
    %c0_39 = arith.constant 0 : index
    %92 = vector.load %arg8[%91, %c0_39] : memref<64x512xf32, #tpu.memory_space<vmem>>, vector<8x512xf32>
    %93 = arith.truncf %88 : vector<8x128xf32> to vector<8x128xbf16>
    %cst_40 = arith.constant dense<0.000000e+00> : vector<8x512xf32>
    %94 = tpu.matmul %93, %10, %cst_40 {dimension_numbers = #tpu.dot_dimension_numbers<[1], [0], [0], [1], [0, 0, 1, 1], [], []>} : vector<8x128xbf16>, vector<128x512xbf16>, vector<8x512xf32> -> vector<8x512xf32>
    %95 = arith.addf %92, %94 : vector<8x512xf32>
    %96 = vector.extract_strided_slice %95 {offsets = [0, 0], sizes = [8, 128], strides = [1, 1]} : vector<8x512xf32> to vector<8x128xf32>
    %97 = vector.extract_strided_slice %95 {offsets = [0, 128], sizes = [8, 128], strides = [1, 1]} : vector<8x512xf32> to vector<8x128xf32>
    %98 = vector.extract_strided_slice %95 {offsets = [0, 256], sizes = [8, 128], strides = [1, 1]} : vector<8x512xf32> to vector<8x128xf32>
    %99 = vector.extract_strided_slice %95 {offsets = [0, 384], sizes = [8, 128], strides = [1, 1]} : vector<8x512xf32> to vector<8x128xf32>
    %cst_41 = arith.constant 5.000000e-01 : f32
    %100 = vector.broadcast %cst_41 : f32 to vector<8x128xf32>
    %101 = arith.mulf %100, %96 : vector<8x128xf32>
    %102 = math.tanh %101 : vector<8x128xf32>
    %cst_42 = arith.constant 5.000000e-01 : f32
    %103 = vector.broadcast %cst_42 : f32 to vector<8x128xf32>
    %104 = arith.mulf %103, %102 : vector<8x128xf32>
    %cst_43 = arith.constant 5.000000e-01 : f32
    %105 = vector.broadcast %cst_43 : f32 to vector<8x128xf32>
    %106 = arith.addf %104, %105 : vector<8x128xf32>
    %cst_44 = arith.constant 5.000000e-01 : f32
    %107 = vector.broadcast %cst_44 : f32 to vector<8x128xf32>
    %108 = arith.mulf %107, %97 : vector<8x128xf32>
    %109 = math.tanh %108 : vector<8x128xf32>
    %cst_45 = arith.constant 5.000000e-01 : f32
    %110 = vector.broadcast %cst_45 : f32 to vector<8x128xf32>
    %111 = arith.mulf %110, %109 : vector<8x128xf32>
    %cst_46 = arith.constant 5.000000e-01 : f32
    %112 = vector.broadcast %cst_46 : f32 to vector<8x128xf32>
    %113 = arith.addf %111, %112 : vector<8x128xf32>
    %114 = math.tanh %98 : vector<8x128xf32>
    %cst_47 = arith.constant 5.000000e-01 : f32
    %115 = vector.broadcast %cst_47 : f32 to vector<8x128xf32>
    %116 = arith.mulf %115, %99 : vector<8x128xf32>
    %117 = math.tanh %116 : vector<8x128xf32>
    %cst_48 = arith.constant 5.000000e-01 : f32
    %118 = vector.broadcast %cst_48 : f32 to vector<8x128xf32>
    %119 = arith.mulf %118, %117 : vector<8x128xf32>
    %cst_49 = arith.constant 5.000000e-01 : f32
    %120 = vector.broadcast %cst_49 : f32 to vector<8x128xf32>
    %121 = arith.addf %119, %120 : vector<8x128xf32>
    %122 = arith.mulf %113, %86 : vector<8x128xf32>
    %123 = arith.mulf %106, %114 : vector<8x128xf32>
    %124 = arith.addf %122, %123 : vector<8x128xf32>
    %125 = math.tanh %124 : vector<8x128xf32>
    %126 = arith.mulf %121, %125 : vector<8x128xf32>
    %c3_i32 = arith.constant 3 : i32
    %c8_i32_50 = arith.constant 8 : i32
    %127 = arith.muli %c3_i32, %c8_i32_50 : i32
    %128 = tpu.assume_multiple %127, 8 : i32
    %129 = arith.index_cast %128 : i32 to index
    %c0_51 = arith.constant 0 : index
    %130 = vector.load %arg8[%129, %c0_51] : memref<64x512xf32, #tpu.memory_space<vmem>>, vector<8x512xf32>
    %131 = arith.truncf %126 : vector<8x128xf32> to vector<8x128xbf16>
    %cst_52 = arith.constant dense<0.000000e+00> : vector<8x512xf32>
    %132 = tpu.matmul %131, %10, %cst_52 {dimension_numbers = #tpu.dot_dimension_numbers<[1], [0], [0], [1], [0, 0, 1, 1], [], []>} : vector<8x128xbf16>, vector<128x512xbf16>, vector<8x512xf32> -> vector<8x512xf32>
    %133 = arith.addf %130, %132 : vector<8x512xf32>
    %134 = vector.extract_strided_slice %133 {offsets = [0, 0], sizes = [8, 128], strides = [1, 1]} : vector<8x512xf32> to vector<8x128xf32>
    %135 = vector.extract_strided_slice %133 {offsets = [0, 128], sizes = [8, 128], strides = [1, 1]} : vector<8x512xf32> to vector<8x128xf32>
    %136 = vector.extract_strided_slice %133 {offsets = [0, 256], sizes = [8, 128], strides = [1, 1]} : vector<8x512xf32> to vector<8x128xf32>
    %137 = vector.extract_strided_slice %133 {offsets = [0, 384], sizes = [8, 128], strides = [1, 1]} : vector<8x512xf32> to vector<8x128xf32>
    %cst_53 = arith.constant 5.000000e-01 : f32
    %138 = vector.broadcast %cst_53 : f32 to vector<8x128xf32>
    %139 = arith.mulf %138, %134 : vector<8x128xf32>
    %140 = math.tanh %139 : vector<8x128xf32>
    %cst_54 = arith.constant 5.000000e-01 : f32
    %141 = vector.broadcast %cst_54 : f32 to vector<8x128xf32>
    %142 = arith.mulf %141, %140 : vector<8x128xf32>
    %cst_55 = arith.constant 5.000000e-01 : f32
    %143 = vector.broadcast %cst_55 : f32 to vector<8x128xf32>
    %144 = arith.addf %142, %143 : vector<8x128xf32>
    %cst_56 = arith.constant 5.000000e-01 : f32
    %145 = vector.broadcast %cst_56 : f32 to vector<8x128xf32>
    %146 = arith.mulf %145, %135 : vector<8x128xf32>
    %147 = math.tanh %146 : vector<8x128xf32>
    %cst_57 = arith.constant 5.000000e-01 : f32
    %148 = vector.broadcast %cst_57 : f32 to vector<8x128xf32>
    %149 = arith.mulf %148, %147 : vector<8x128xf32>
    %cst_58 = arith.constant 5.000000e-01 : f32
    %150 = vector.broadcast %cst_58 : f32 to vector<8x128xf32>
    %151 = arith.addf %149, %150 : vector<8x128xf32>
    %152 = math.tanh %136 : vector<8x128xf32>
    %cst_59 = arith.constant 5.000000e-01 : f32
    %153 = vector.broadcast %cst_59 : f32 to vector<8x128xf32>
    %154 = arith.mulf %153, %137 : vector<8x128xf32>
    %155 = math.tanh %154 : vector<8x128xf32>
    %cst_60 = arith.constant 5.000000e-01 : f32
    %156 = vector.broadcast %cst_60 : f32 to vector<8x128xf32>
    %157 = arith.mulf %156, %155 : vector<8x128xf32>
    %cst_61 = arith.constant 5.000000e-01 : f32
    %158 = vector.broadcast %cst_61 : f32 to vector<8x128xf32>
    %159 = arith.addf %157, %158 : vector<8x128xf32>
    %160 = arith.mulf %151, %124 : vector<8x128xf32>
    %161 = arith.mulf %144, %152 : vector<8x128xf32>
    %162 = arith.addf %160, %161 : vector<8x128xf32>
    %163 = math.tanh %162 : vector<8x128xf32>
    %164 = arith.mulf %159, %163 : vector<8x128xf32>
    %c4_i32 = arith.constant 4 : i32
    %c8_i32_62 = arith.constant 8 : i32
    %165 = arith.muli %c4_i32, %c8_i32_62 : i32
    %166 = tpu.assume_multiple %165, 8 : i32
    %167 = arith.index_cast %166 : i32 to index
    %c0_63 = arith.constant 0 : index
    %168 = vector.load %arg8[%167, %c0_63] : memref<64x512xf32, #tpu.memory_space<vmem>>, vector<8x512xf32>
    %169 = arith.truncf %164 : vector<8x128xf32> to vector<8x128xbf16>
    %cst_64 = arith.constant dense<0.000000e+00> : vector<8x512xf32>
    %170 = tpu.matmul %169, %10, %cst_64 {dimension_numbers = #tpu.dot_dimension_numbers<[1], [0], [0], [1], [0, 0, 1, 1], [], []>} : vector<8x128xbf16>, vector<128x512xbf16>, vector<8x512xf32> -> vector<8x512xf32>
    %171 = arith.addf %168, %170 : vector<8x512xf32>
    %172 = vector.extract_strided_slice %171 {offsets = [0, 0], sizes = [8, 128], strides = [1, 1]} : vector<8x512xf32> to vector<8x128xf32>
    %173 = vector.extract_strided_slice %171 {offsets = [0, 128], sizes = [8, 128], strides = [1, 1]} : vector<8x512xf32> to vector<8x128xf32>
    %174 = vector.extract_strided_slice %171 {offsets = [0, 256], sizes = [8, 128], strides = [1, 1]} : vector<8x512xf32> to vector<8x128xf32>
    %175 = vector.extract_strided_slice %171 {offsets = [0, 384], sizes = [8, 128], strides = [1, 1]} : vector<8x512xf32> to vector<8x128xf32>
    %cst_65 = arith.constant 5.000000e-01 : f32
    %176 = vector.broadcast %cst_65 : f32 to vector<8x128xf32>
    %177 = arith.mulf %176, %172 : vector<8x128xf32>
    %178 = math.tanh %177 : vector<8x128xf32>
    %cst_66 = arith.constant 5.000000e-01 : f32
    %179 = vector.broadcast %cst_66 : f32 to vector<8x128xf32>
    %180 = arith.mulf %179, %178 : vector<8x128xf32>
    %cst_67 = arith.constant 5.000000e-01 : f32
    %181 = vector.broadcast %cst_67 : f32 to vector<8x128xf32>
    %182 = arith.addf %180, %181 : vector<8x128xf32>
    %cst_68 = arith.constant 5.000000e-01 : f32
    %183 = vector.broadcast %cst_68 : f32 to vector<8x128xf32>
    %184 = arith.mulf %183, %173 : vector<8x128xf32>
    %185 = math.tanh %184 : vector<8x128xf32>
    %cst_69 = arith.constant 5.000000e-01 : f32
    %186 = vector.broadcast %cst_69 : f32 to vector<8x128xf32>
    %187 = arith.mulf %186, %185 : vector<8x128xf32>
    %cst_70 = arith.constant 5.000000e-01 : f32
    %188 = vector.broadcast %cst_70 : f32 to vector<8x128xf32>
    %189 = arith.addf %187, %188 : vector<8x128xf32>
    %190 = math.tanh %174 : vector<8x128xf32>
    %cst_71 = arith.constant 5.000000e-01 : f32
    %191 = vector.broadcast %cst_71 : f32 to vector<8x128xf32>
    %192 = arith.mulf %191, %175 : vector<8x128xf32>
    %193 = math.tanh %192 : vector<8x128xf32>
    %cst_72 = arith.constant 5.000000e-01 : f32
    %194 = vector.broadcast %cst_72 : f32 to vector<8x128xf32>
    %195 = arith.mulf %194, %193 : vector<8x128xf32>
    %cst_73 = arith.constant 5.000000e-01 : f32
    %196 = vector.broadcast %cst_73 : f32 to vector<8x128xf32>
    %197 = arith.addf %195, %196 : vector<8x128xf32>
    %198 = arith.mulf %189, %162 : vector<8x128xf32>
    %199 = arith.mulf %182, %190 : vector<8x128xf32>
    %200 = arith.addf %198, %199 : vector<8x128xf32>
    %201 = math.tanh %200 : vector<8x128xf32>
    %202 = arith.mulf %197, %201 : vector<8x128xf32>
    %c5_i32 = arith.constant 5 : i32
    %c8_i32_74 = arith.constant 8 : i32
    %203 = arith.muli %c5_i32, %c8_i32_74 : i32
    %204 = tpu.assume_multiple %203, 8 : i32
    %205 = arith.index_cast %204 : i32 to index
    %c0_75 = arith.constant 0 : index
    %206 = vector.load %arg8[%205, %c0_75] : memref<64x512xf32, #tpu.memory_space<vmem>>, vector<8x512xf32>
    %207 = arith.truncf %202 : vector<8x128xf32> to vector<8x128xbf16>
    %cst_76 = arith.constant dense<0.000000e+00> : vector<8x512xf32>
    %208 = tpu.matmul %207, %10, %cst_76 {dimension_numbers = #tpu.dot_dimension_numbers<[1], [0], [0], [1], [0, 0, 1, 1], [], []>} : vector<8x128xbf16>, vector<128x512xbf16>, vector<8x512xf32> -> vector<8x512xf32>
    %209 = arith.addf %206, %208 : vector<8x512xf32>
    %210 = vector.extract_strided_slice %209 {offsets = [0, 0], sizes = [8, 128], strides = [1, 1]} : vector<8x512xf32> to vector<8x128xf32>
    %211 = vector.extract_strided_slice %209 {offsets = [0, 128], sizes = [8, 128], strides = [1, 1]} : vector<8x512xf32> to vector<8x128xf32>
    %212 = vector.extract_strided_slice %209 {offsets = [0, 256], sizes = [8, 128], strides = [1, 1]} : vector<8x512xf32> to vector<8x128xf32>
    %213 = vector.extract_strided_slice %209 {offsets = [0, 384], sizes = [8, 128], strides = [1, 1]} : vector<8x512xf32> to vector<8x128xf32>
    %cst_77 = arith.constant 5.000000e-01 : f32
    %214 = vector.broadcast %cst_77 : f32 to vector<8x128xf32>
    %215 = arith.mulf %214, %210 : vector<8x128xf32>
    %216 = math.tanh %215 : vector<8x128xf32>
    %cst_78 = arith.constant 5.000000e-01 : f32
    %217 = vector.broadcast %cst_78 : f32 to vector<8x128xf32>
    %218 = arith.mulf %217, %216 : vector<8x128xf32>
    %cst_79 = arith.constant 5.000000e-01 : f32
    %219 = vector.broadcast %cst_79 : f32 to vector<8x128xf32>
    %220 = arith.addf %218, %219 : vector<8x128xf32>
    %cst_80 = arith.constant 5.000000e-01 : f32
    %221 = vector.broadcast %cst_80 : f32 to vector<8x128xf32>
    %222 = arith.mulf %221, %211 : vector<8x128xf32>
    %223 = math.tanh %222 : vector<8x128xf32>
    %cst_81 = arith.constant 5.000000e-01 : f32
    %224 = vector.broadcast %cst_81 : f32 to vector<8x128xf32>
    %225 = arith.mulf %224, %223 : vector<8x128xf32>
    %cst_82 = arith.constant 5.000000e-01 : f32
    %226 = vector.broadcast %cst_82 : f32 to vector<8x128xf32>
    %227 = arith.addf %225, %226 : vector<8x128xf32>
    %228 = math.tanh %212 : vector<8x128xf32>
    %cst_83 = arith.constant 5.000000e-01 : f32
    %229 = vector.broadcast %cst_83 : f32 to vector<8x128xf32>
    %230 = arith.mulf %229, %213 : vector<8x128xf32>
    %231 = math.tanh %230 : vector<8x128xf32>
    %cst_84 = arith.constant 5.000000e-01 : f32
    %232 = vector.broadcast %cst_84 : f32 to vector<8x128xf32>
    %233 = arith.mulf %232, %231 : vector<8x128xf32>
    %cst_85 = arith.constant 5.000000e-01 : f32
    %234 = vector.broadcast %cst_85 : f32 to vector<8x128xf32>
    %235 = arith.addf %233, %234 : vector<8x128xf32>
    %236 = arith.mulf %227, %200 : vector<8x128xf32>
    %237 = arith.mulf %220, %228 : vector<8x128xf32>
    %238 = arith.addf %236, %237 : vector<8x128xf32>
    %239 = math.tanh %238 : vector<8x128xf32>
    %240 = arith.mulf %235, %239 : vector<8x128xf32>
    %c6_i32 = arith.constant 6 : i32
    %c8_i32_86 = arith.constant 8 : i32
    %241 = arith.muli %c6_i32, %c8_i32_86 : i32
    %242 = tpu.assume_multiple %241, 8 : i32
    %243 = arith.index_cast %242 : i32 to index
    %c0_87 = arith.constant 0 : index
    %244 = vector.load %arg8[%243, %c0_87] : memref<64x512xf32, #tpu.memory_space<vmem>>, vector<8x512xf32>
    %245 = arith.truncf %240 : vector<8x128xf32> to vector<8x128xbf16>
    %cst_88 = arith.constant dense<0.000000e+00> : vector<8x512xf32>
    %246 = tpu.matmul %245, %10, %cst_88 {dimension_numbers = #tpu.dot_dimension_numbers<[1], [0], [0], [1], [0, 0, 1, 1], [], []>} : vector<8x128xbf16>, vector<128x512xbf16>, vector<8x512xf32> -> vector<8x512xf32>
    %247 = arith.addf %244, %246 : vector<8x512xf32>
    %248 = vector.extract_strided_slice %247 {offsets = [0, 0], sizes = [8, 128], strides = [1, 1]} : vector<8x512xf32> to vector<8x128xf32>
    %249 = vector.extract_strided_slice %247 {offsets = [0, 128], sizes = [8, 128], strides = [1, 1]} : vector<8x512xf32> to vector<8x128xf32>
    %250 = vector.extract_strided_slice %247 {offsets = [0, 256], sizes = [8, 128], strides = [1, 1]} : vector<8x512xf32> to vector<8x128xf32>
    %251 = vector.extract_strided_slice %247 {offsets = [0, 384], sizes = [8, 128], strides = [1, 1]} : vector<8x512xf32> to vector<8x128xf32>
    %cst_89 = arith.constant 5.000000e-01 : f32
    %252 = vector.broadcast %cst_89 : f32 to vector<8x128xf32>
    %253 = arith.mulf %252, %248 : vector<8x128xf32>
    %254 = math.tanh %253 : vector<8x128xf32>
    %cst_90 = arith.constant 5.000000e-01 : f32
    %255 = vector.broadcast %cst_90 : f32 to vector<8x128xf32>
    %256 = arith.mulf %255, %254 : vector<8x128xf32>
    %cst_91 = arith.constant 5.000000e-01 : f32
    %257 = vector.broadcast %cst_91 : f32 to vector<8x128xf32>
    %258 = arith.addf %256, %257 : vector<8x128xf32>
    %cst_92 = arith.constant 5.000000e-01 : f32
    %259 = vector.broadcast %cst_92 : f32 to vector<8x128xf32>
    %260 = arith.mulf %259, %249 : vector<8x128xf32>
    %261 = math.tanh %260 : vector<8x128xf32>
    %cst_93 = arith.constant 5.000000e-01 : f32
    %262 = vector.broadcast %cst_93 : f32 to vector<8x128xf32>
    %263 = arith.mulf %262, %261 : vector<8x128xf32>
    %cst_94 = arith.constant 5.000000e-01 : f32
    %264 = vector.broadcast %cst_94 : f32 to vector<8x128xf32>
    %265 = arith.addf %263, %264 : vector<8x128xf32>
    %266 = math.tanh %250 : vector<8x128xf32>
    %cst_95 = arith.constant 5.000000e-01 : f32
    %267 = vector.broadcast %cst_95 : f32 to vector<8x128xf32>
    %268 = arith.mulf %267, %251 : vector<8x128xf32>
    %269 = math.tanh %268 : vector<8x128xf32>
    %cst_96 = arith.constant 5.000000e-01 : f32
    %270 = vector.broadcast %cst_96 : f32 to vector<8x128xf32>
    %271 = arith.mulf %270, %269 : vector<8x128xf32>
    %cst_97 = arith.constant 5.000000e-01 : f32
    %272 = vector.broadcast %cst_97 : f32 to vector<8x128xf32>
    %273 = arith.addf %271, %272 : vector<8x128xf32>
    %274 = arith.mulf %265, %238 : vector<8x128xf32>
    %275 = arith.mulf %258, %266 : vector<8x128xf32>
    %276 = arith.addf %274, %275 : vector<8x128xf32>
    %277 = math.tanh %276 : vector<8x128xf32>
    %278 = arith.mulf %273, %277 : vector<8x128xf32>
    %c7_i32 = arith.constant 7 : i32
    %c8_i32_98 = arith.constant 8 : i32
    %279 = arith.muli %c7_i32, %c8_i32_98 : i32
    %280 = tpu.assume_multiple %279, 8 : i32
    %281 = arith.index_cast %280 : i32 to index
    %c0_99 = arith.constant 0 : index
    %282 = vector.load %arg8[%281, %c0_99] : memref<64x512xf32, #tpu.memory_space<vmem>>, vector<8x512xf32>
    %283 = arith.truncf %278 : vector<8x128xf32> to vector<8x128xbf16>
    %cst_100 = arith.constant dense<0.000000e+00> : vector<8x512xf32>
    %284 = tpu.matmul %283, %10, %cst_100 {dimension_numbers = #tpu.dot_dimension_numbers<[1], [0], [0], [1], [0, 0, 1, 1], [], []>} : vector<8x128xbf16>, vector<128x512xbf16>, vector<8x512xf32> -> vector<8x512xf32>
    %285 = arith.addf %282, %284 : vector<8x512xf32>
    %286 = vector.extract_strided_slice %285 {offsets = [0, 0], sizes = [8, 128], strides = [1, 1]} : vector<8x512xf32> to vector<8x128xf32>
    %287 = vector.extract_strided_slice %285 {offsets = [0, 128], sizes = [8, 128], strides = [1, 1]} : vector<8x512xf32> to vector<8x128xf32>
    %288 = vector.extract_strided_slice %285 {offsets = [0, 256], sizes = [8, 128], strides = [1, 1]} : vector<8x512xf32> to vector<8x128xf32>
    %289 = vector.extract_strided_slice %285 {offsets = [0, 384], sizes = [8, 128], strides = [1, 1]} : vector<8x512xf32> to vector<8x128xf32>
    %cst_101 = arith.constant 5.000000e-01 : f32
    %290 = vector.broadcast %cst_101 : f32 to vector<8x128xf32>
    %291 = arith.mulf %290, %286 : vector<8x128xf32>
    %292 = math.tanh %291 : vector<8x128xf32>
    %cst_102 = arith.constant 5.000000e-01 : f32
    %293 = vector.broadcast %cst_102 : f32 to vector<8x128xf32>
    %294 = arith.mulf %293, %292 : vector<8x128xf32>
    %cst_103 = arith.constant 5.000000e-01 : f32
    %295 = vector.broadcast %cst_103 : f32 to vector<8x128xf32>
    %296 = arith.addf %294, %295 : vector<8x128xf32>
    %cst_104 = arith.constant 5.000000e-01 : f32
    %297 = vector.broadcast %cst_104 : f32 to vector<8x128xf32>
    %298 = arith.mulf %297, %287 : vector<8x128xf32>
    %299 = math.tanh %298 : vector<8x128xf32>
    %cst_105 = arith.constant 5.000000e-01 : f32
    %300 = vector.broadcast %cst_105 : f32 to vector<8x128xf32>
    %301 = arith.mulf %300, %299 : vector<8x128xf32>
    %cst_106 = arith.constant 5.000000e-01 : f32
    %302 = vector.broadcast %cst_106 : f32 to vector<8x128xf32>
    %303 = arith.addf %301, %302 : vector<8x128xf32>
    %304 = math.tanh %288 : vector<8x128xf32>
    %cst_107 = arith.constant 5.000000e-01 : f32
    %305 = vector.broadcast %cst_107 : f32 to vector<8x128xf32>
    %306 = arith.mulf %305, %289 : vector<8x128xf32>
    %307 = math.tanh %306 : vector<8x128xf32>
    %cst_108 = arith.constant 5.000000e-01 : f32
    %308 = vector.broadcast %cst_108 : f32 to vector<8x128xf32>
    %309 = arith.mulf %308, %307 : vector<8x128xf32>
    %cst_109 = arith.constant 5.000000e-01 : f32
    %310 = vector.broadcast %cst_109 : f32 to vector<8x128xf32>
    %311 = arith.addf %309, %310 : vector<8x128xf32>
    %312 = arith.mulf %303, %276 : vector<8x128xf32>
    %313 = arith.mulf %296, %304 : vector<8x128xf32>
    %314 = arith.addf %312, %313 : vector<8x128xf32>
    %315 = math.tanh %314 : vector<8x128xf32>
    %316 = arith.mulf %311, %315 : vector<8x128xf32>
    %c8_i32_110 = arith.constant 8 : i32
    %c0_111 = arith.constant 0 : index
    %c0_112 = arith.constant 0 : index
    %317 = vector.load %arg9[%c0_111, %c0_112] : memref<8x128xf32, #tpu.memory_space<vmem>>, vector<8x128xf32>
    tpu.vector_store %arg9[%c0_111, %c0_112], %316 {strides = array<i32>} : memref<8x128xf32, #tpu.memory_space<vmem>>, vector<8x128xf32>,
    %c0_113 = arith.constant 0 : index
    %c0_114 = arith.constant 0 : index
    %318 = vector.load %arg10[%c0_113, %c0_114] : memref<8x128xf32, #tpu.memory_space<vmem>>, vector<8x128xf32>
    tpu.vector_store %arg10[%c0_113, %c0_114], %314 {strides = array<i32>} : memref<8x128xf32, #tpu.memory_space<vmem>>, vector<8x128xf32>,
    %c0_i32_115 = arith.constant 0 : i32
    %319 = arith.cmpi eq, %arg0, %c0_i32_115 : i32
    %320 = arith.extui %319 : i1 to i32
    %c0_i32_116 = arith.constant 0 : i32
    %321 = arith.cmpi ne, %320, %c0_i32_116 : i32
    scf.if %321 {
      %322 = arith.truncf %316 : vector<8x128xf32> to vector<8x128xbf16>
      %c0_117 = arith.constant 0 : index
      %c0_118 = arith.constant 0 : index
      %323 = vector.load %arg5[%c0_117, %c0_118] : memref<128x128xbf16, #tpu.memory_space<vmem>>, vector<128x128xbf16>
      %cst_119 = arith.constant dense<0.000000e+00> : vector<8x128xf32>
      %324 = tpu.matmul %322, %323, %cst_119 {dimension_numbers = #tpu.dot_dimension_numbers<[1], [0], [0], [1], [0, 0, 1, 1], [], []>} : vector<8x128xbf16>, vector<128x128xbf16>, vector<8x128xf32> -> vector<8x128xf32>
      %c0_120 = arith.constant 0 : index
      %c0_121 = arith.constant 0 : index
      %325 = vector.load %arg6[%c0_120, %c0_121] : memref<1x128xf32, #tpu.memory_space<vmem>>, vector<1x128xf32>
      %326 = vector.broadcast %325 : vector<1x128xf32> to vector<8x128xf32>
      %327 = arith.addf %324, %326 : vector<8x128xf32>
      %c0_122 = arith.constant 0 : index
      %c0_123 = arith.constant 0 : index
      %328 = vector.load %arg7[%c0_122, %c0_123] : memref<8x128xf32, #tpu.memory_space<vmem>>, vector<8x128xf32>
      tpu.vector_store %arg7[%c0_122, %c0_123], %327 {strides = array<i32>} : memref<8x128xf32, #tpu.memory_space<vmem>>, vector<8x128xf32>,
    } else {
    }
    return
  }
  func.func @transform_0(%arg0: i32) -> (i32, i32) {
    %c0_i32 = arith.constant 0 : i32
    %c0_i32_0 = arith.constant 0 : i32
    return %arg0, %c0_i32 : i32, i32
  }
  func.func @transform_1(%arg0: i32) -> (i32, i32) {
    %c0_i32 = arith.constant 0 : i32
    %c0_i32_0 = arith.constant 0 : i32
    %c0_i32_1 = arith.constant 0 : i32
    return %c0_i32, %c0_i32_0 : i32, i32
  }
  func.func @transform_2(%arg0: i32) -> (i32, i32) {
    %c0_i32 = arith.constant 0 : i32
    %c0_i32_0 = arith.constant 0 : i32
    %c0_i32_1 = arith.constant 0 : i32
    return %c0_i32, %c0_i32_0 : i32, i32
  }
  func.func @transform_3(%arg0: i32) -> (i32, i32) {
    %c0_i32 = arith.constant 0 : i32
    %c0_i32_0 = arith.constant 0 : i32
    %c0_i32_1 = arith.constant 0 : i32
    return %c0_i32, %c0_i32_0 : i32, i32
  }
  func.func @transform_4(%arg0: i32) -> (i32, i32) {
    %c0_i32 = arith.constant 0 : i32
    %c0_i32_0 = arith.constant 0 : i32
    %c0_i32_1 = arith.constant 0 : i32
    return %c0_i32, %c0_i32_0 : i32, i32
  }
  func.func @transform_5(%arg0: i32) -> (i32, i32) {
    %c0_i32 = arith.constant 0 : i32
    %c0_i32_0 = arith.constant 0 : i32
    %c0_i32_1 = arith.constant 0 : i32
    return %c0_i32, %c0_i32_0 : i32, i32
  }
  func.func @transform_6(%arg0: i32) -> (i32, i32) {
    %c0_i32 = arith.constant 0 : i32
    %c0_i32_0 = arith.constant 0 : i32
    %c0_i32_1 = arith.constant 0 : i32
    return %c0_i32, %c0_i32_0 : i32, i32
  }
}

</mosaic_0001>

<llo_original>
// kernel: lstm_forward.1
$region0: #{lstm_forward.1}
  #allocation0 [shape = 'u32[]', space=smem, size = 0x4, offset = 0x4, fixed_abs, tag = 'smem constant byte address 0x4 - core index']
  #allocation1 [shape = 'u32[144,128]{1,0:T(1,128)}', space=vmem, size = 0x12000, scoped, tag = 'internal scratch']
  #allocation2 [shape = 'f32[64,512]{1,0:T(8,128)}', space=vmem, size = 0x20000, scoped, tag = 'scratch operand']
  #allocation3 [shape = 'f32[8,128]{1,0:T(8,128)}', space=vmem, size = 0x1000, scoped, tag = 'scratch operand']
  #allocation4 [shape = 'f32[8,128]{1,0:T(8,128)}', space=vmem, size = 0x1000, scoped, tag = 'scratch operand']
  %s0 = inlined_call_operand.vmem [shape: bf16[64,128], index: 0, kind: input, shape index: {}]
  %s1 = inlined_call_operand.vmem [shape: bf16[128,512], index: 1, kind: input, shape index: {}]
  %s2 = inlined_call_operand.vmem [shape: bf16[128,512], index: 2, kind: input, shape index: {}]
  %s3 = inlined_call_operand.vmem [shape: f32[1,512], index: 3, kind: input, shape index: {}]
  %s4 = inlined_call_operand.vmem [shape: bf16[128,128], index: 4, kind: input, shape index: {}]
  %s5 = inlined_call_operand.vmem [shape: f32[1,128], index: 5, kind: input, shape index: {}]
  %s6 = inlined_call_operand.vmem [shape: f32[8,128], index: 6, kind: output, shape index: {}]
  %s7 = sld [smem:[#allocation0]]
  $region42: #{lstm_forward.1} parent=0
    _
  %s9 = ssub.s32 1, %s7
  %s10 = scalar_select 0, %s9, %s7
  // Predicated region
  $region2: #{lstm_forward.1} parent=0 // pred_check
    _
  $region3: #{lstm_forward.1} parent=0 // pred_check_branch
    %12 = sbr.rel (0) target = $region5
  $region4: #{lstm_forward.1} parent=0 // pred_region
    _
  $region5: #{lstm_forward.1} parent=0 // pred_fallthru
    _
  // Predicated region
  $region6: #{lstm_forward.1} parent=0 // pred_check
    _
  $region7: #{lstm_forward.1} parent=0 // pred_check_branch
    %14 = sbr.rel (0) target = $region9
  $region8: #{lstm_forward.1} parent=0 // pred_region
    _
  $region9: #{lstm_forward.1} parent=0 // pred_fallthru
    _
  // Predicated region
  $region10: #{lstm_forward.1} parent=0 // pred_check
    _
  $region11: #{lstm_forward.1} parent=0 // pred_check_branch
    %16 = sbr.rel (0) target = $region13
  $region12: #{lstm_forward.1} parent=0 // pred_region
    _
  $region13: #{lstm_forward.1} parent=0 // pred_fallthru
    _
  // Predicated region
  $region14: #{lstm_forward.1} parent=0 // pred_check
    _
  $region15: #{lstm_forward.1} parent=0 // pred_check_branch
    %18 = sbr.rel (0) target = $region17
  $region16: #{lstm_forward.1} parent=0 // pred_region
    _
  $region17: #{lstm_forward.1} parent=0 // pred_fallthru
    _
  // Predicated region
  $region18: #{lstm_forward.1} parent=0 // pred_check
    _
  $region19: #{lstm_forward.1} parent=0 // pred_check_branch
    %20 = sbr.rel (0) target = $region21
  $region20: #{lstm_forward.1} parent=0 // pred_region
    _
  $region21: #{lstm_forward.1} parent=0 // pred_fallthru
    _
  // Predicated region
  $region22: #{lstm_forward.1} parent=0 // pred_check
    _
  $region23: #{lstm_forward.1} parent=0 // pred_check_branch
    %22 = sbr.rel (0) target = $region25
  $region24: #{lstm_forward.1} parent=0 // pred_region
    _
  $region25: #{lstm_forward.1} parent=0 // pred_fallthru
    _
  %p24 = scmp.eq.s32.totalorder 0, 0
  // Predicated region
  $region26: #{lstm_forward.1} parent=0 // pred_check
    %p25 = pneg %p24
  $region27: #{lstm_forward.1} parent=0 // pred_check_branch
    %27 = sbr.rel (%p25) target = $region29
  $region28: #{lstm_forward.1} parent=0 // pred_region
    %28 = vst [vmem:[#allocation3] sm:$0xff] 0.0
    %29 = vst [vmem:[#allocation4] sm:$0xff] 0.0
  $region29: #{lstm_forward.1} parent=0 // pred_fallthru
    _
  %v30 = vld [vmem:[%s0] sm:$0xf]
  %v31 = vld [vmem:[%s0 + $0x4] sm:$0xf]
  %v32 = vld [vmem:[%s0 + $0x8] sm:$0xf]
  %v33 = vld [vmem:[%s0 + $0xc] sm:$0xf]
  %v34 = vld [vmem:[%s0 + $0x10] sm:$0xf]
  %v35 = vld [vmem:[%s0 + $0x14] sm:$0xf]
  %v36 = vld [vmem:[%s0 + $0x18] sm:$0xf]
  %v37 = vld [vmem:[%s0 + $0x1c] sm:$0xf]
  %v38 = vld [vmem:[%s1] sm:$0xff]
  %v39 = vld [vmem:[%s1 + $0x8] sm:$0xff]
  %v40 = vld [vmem:[%s1 + $0x10] sm:$0xff]
  %v41 = vld [vmem:[%s1 + $0x18] sm:$0xff]
  %v42 = vld [vmem:[%s1 + $0x20] sm:$0xff]
  %v43 = vld [vmem:[%s1 + $0x28] sm:$0xff]
  %v44 = vld [vmem:[%s1 + $0x30] sm:$0xff]
  %v45 = vld [vmem:[%s1 + $0x38] sm:$0xff]
  %v46 = vld [vmem:[%s1 + $0x40] sm:$0xff]
  %v47 = vld [vmem:[%s1 + $0x48] sm:$0xff]
  %v48 = vld [vmem:[%s1 + $0x50] sm:$0xff]
  %v49 = vld [vmem:[%s1 + $0x58] sm:$0xff]
  %v50 = vld [vmem:[%s1 + $0x60] sm:$0xff]
  %v51 = vld [vmem:[%s1 + $0x68] sm:$0xff]
  %v52 = vld [vmem:[%s1 + $0x70] sm:$0xff]
  %v53 = vld [vmem:[%s1 + $0x78] sm:$0xff]
  %v54 = vld [vmem:[%s1 + $0x80] sm:$0xff]
  %v55 = vld [vmem:[%s1 + $0x88] sm:$0xff]
  %v56 = vld [vmem:[%s1 + $0x90] sm:$0xff]
  %v57 = vld [vmem:[%s1 + $0x98] sm:$0xff]
  %v58 = vld [vmem:[%s1 + $0xa0] sm:$0xff]
  %v59 = vld [vmem:[%s1 + $0xa8] sm:$0xff]
  %v60 = vld [vmem:[%s1 + $0xb0] sm:$0xff]
  %v61 = vld [vmem:[%s1 + $0xb8] sm:$0xff]
  %v62 = vld [vmem:[%s1 + $0xc0] sm:$0xff]
  %v63 = vld [vmem:[%s1 + $0xc8] sm:$0xff]
  %v64 = vld [vmem:[%s1 + $0xd0] sm:$0xff]
  %v65 = vld [vmem:[%s1 + $0xd8] sm:$0xff]
  %v66 = vld [vmem:[%s1 + $0xe0] sm:$0xff]
  %v67 = vld [vmem:[%s1 + $0xe8] sm:$0xff]
  %v68 = vld [vmem:[%s1 + $0xf0] sm:$0xff]
  %v69 = vld [vmem:[%s1 + $0xf8] sm:$0xff]
  %v70 = vld [vmem:[%s3] sm:$0xf]
  %v72 = vlaneseq
  %v73 = vshrl.u32 %v72, 7
  %v74 = vsub.s32 0, %v73
  %v75 = vrot.slane %v70, %v74
  %v76 = vlaneseq
  %v77 = vshrl.u32 %v76, 7
  %v78 = vsub.s32 1, %v77
  %v79 = vrot.slane %v70, %v78
  %v80 = vlaneseq
  %v81 = vshrl.u32 %v80, 7
  %v82 = vsub.s32 2, %v81
  %v83 = vrot.slane %v70, %v82
  %v84 = vlaneseq
  %v85 = vshrl.u32 %v84, 7
  %v86 = vsub.s32 3, %v85
  %v87 = vrot.slane %v70, %v86
  %v100 = vunpack.c.l.b16 %v30
  %v101 = vunpack.c.l.b16 %v31
  %v102 = vunpack.c.l.b16 %v32
  %v103 = vunpack.c.l.b16 %v33
  %v104 = vunpack.c.l.b16 %v34
  %v105 = vunpack.c.l.b16 %v35
  %v106 = vunpack.c.l.b16 %v36
  %v107 = vunpack.c.l.b16 %v37
  %v108 = vpack.c.b16 %v101, %v100
  %v109 = vpack.c.b16 %v103, %v102
  %v110 = vpack.c.b16 %v105, %v104
  %v111 = vpack.c.b16 %v107, %v106
  %v148 = vunpack.c.l.b16 %v38
  %v149 = vunpack.c.h.b16 %v38
  %v150 = vunpack.c.l.b16 %v39
  %v151 = vunpack.c.h.b16 %v39
  %v152 = vunpack.c.l.b16 %v40
  %v153 = vunpack.c.h.b16 %v40
  %v154 = vunpack.c.l.b16 %v41
  %v155 = vunpack.c.h.b16 %v41
  %v156 = vunpack.c.l.b16 %v42
  %v157 = vunpack.c.h.b16 %v42
  %v158 = vunpack.c.l.b16 %v43
  %v159 = vunpack.c.h.b16 %v43
  %v160 = vunpack.c.l.b16 %v44
  %v161 = vunpack.c.h.b16 %v44
  %v162 = vunpack.c.l.b16 %v45
  %v163 = vunpack.c.h.b16 %v45
  %v164 = vunpack.c.l.b16 %v46
  %v165 = vunpack.c.h.b16 %v46
  %v166 = vunpack.c.l.b16 %v47
  %v167 = vunpack.c.h.b16 %v47
  %v168 = vunpack.c.l.b16 %v48
  %v169 = vunpack.c.h.b16 %v48
  %v170 = vunpack.c.l.b16 %v49
  %v171 = vunpack.c.h.b16 %v49
  %v172 = vunpack.c.l.b16 %v50
  %v173 = vunpack.c.h.b16 %v50
  %v174 = vunpack.c.l.b16 %v51
  %v175 = vunpack.c.h.b16 %v51
  %v176 = vunpack.c.l.b16 %v52
  %v177 = vunpack.c.h.b16 %v52
  %v178 = vunpack.c.l.b16 %v53
  %v179 = vunpack.c.h.b16 %v53
  %v180 = vunpack.c.l.b16 %v54
  %v181 = vunpack.c.h.b16 %v54
  %v182 = vunpack.c.l.b16 %v55
  %v183 = vunpack.c.h.b16 %v55
  %v184 = vunpack.c.l.b16 %v56
  %v185 = vunpack.c.h.b16 %v56
  %v186 = vunpack.c.l.b16 %v57
  %v187 = vunpack.c.h.b16 %v57
  %v188 = vunpack.c.l.b16 %v58
  %v189 = vunpack.c.h.b16 %v58
  %v190 = vunpack.c.l.b16 %v59
  %v191 = vunpack.c.h.b16 %v59
  %v192 = vunpack.c.l.b16 %v60
  %v193 = vunpack.c.h.b16 %v60
  %v194 = vunpack.c.l.b16 %v61
  %v195 = vunpack.c.h.b16 %v61
  %v196 = vunpack.c.l.b16 %v62
  %v197 = vunpack.c.h.b16 %v62
  %v198 = vunpack.c.l.b16 %v63
  %v199 = vunpack.c.h.b16 %v63
  %v200 = vunpack.c.l.b16 %v64
  %v201 = vunpack.c.h.b16 %v64
  %v202 = vunpack.c.l.b16 %v65
  %v203 = vunpack.c.h.b16 %v65
  %v204 = vunpack.c.l.b16 %v66
  %v205 = vunpack.c.h.b16 %v66
  %v206 = vunpack.c.l.b16 %v67
  %v207 = vunpack.c.h.b16 %v67
  %v208 = vunpack.c.l.b16 %v68
  %v209 = vunpack.c.h.b16 %v68
  %v210 = vunpack.c.l.b16 %v69
  %v211 = vunpack.c.h.b16 %v69
  %v212 = vpack.c.b16 %v152, %v148
  %v213 = vpack.c.b16 %v153, %v149
  %v214 = vpack.c.b16 %v154, %v150
  %v215 = vpack.c.b16 %v155, %v151
  %v216 = vpack.c.b16 %v160, %v156
  %v217 = vpack.c.b16 %v161, %v157
  %v218 = vpack.c.b16 %v162, %v158
  %v219 = vpack.c.b16 %v163, %v159
  %v220 = vpack.c.b16 %v168, %v164
  %v221 = vpack.c.b16 %v169, %v165
  %v222 = vpack.c.b16 %v170, %v166
  %v223 = vpack.c.b16 %v171, %v167
  %v224 = vpack.c.b16 %v176, %v172
  %v225 = vpack.c.b16 %v177, %v173
  %v226 = vpack.c.b16 %v178, %v174
  %v227 = vpack.c.b16 %v179, %v175
  %v228 = vpack.c.b16 %v184, %v180
  %v229 = vpack.c.b16 %v185, %v181
  %v230 = vpack.c.b16 %v186, %v182
  %v231 = vpack.c.b16 %v187, %v183
  %v232 = vpack.c.b16 %v192, %v188
  %v233 = vpack.c.b16 %v193, %v189
  %v234 = vpack.c.b16 %v194, %v190
  %v235 = vpack.c.b16 %v195, %v191
  %v236 = vpack.c.b16 %v200, %v196
  %v237 = vpack.c.b16 %v201, %v197
  %v238 = vpack.c.b16 %v202, %v198
  %v239 = vpack.c.b16 %v203, %v199
  %v240 = vpack.c.b16 %v208, %v204
  %v241 = vpack.c.b16 %v209, %v205
  %v242 = vpack.c.b16 %v210, %v206
  %v243 = vpack.c.b16 %v211, %v207
  %276 = vmatprep.subr.bf16.mxu0 %v213
  %277 = vmatpush1.bf16.msra.mxu0 %v212
  %278 = vmatprep.subr.bf16.mxu0 %v217
  %279 = vmatpush1.bf16.msra.mxu0 %v216
  %280 = vmatprep.subr.bf16.mxu0 %v221
  %281 = vmatpush1.bf16.msra.mxu0 %v220
  %282 = vmatprep.subr.bf16.mxu0 %v225
  %283 = vmatpush1.bf16.msra.mxu0 %v224
  %284 = vmatprep.subr.bf16.mxu0 %v229
  %285 = vmatpush1.bf16.msra.mxu0 %v228
  %286 = vmatprep.subr.bf16.mxu0 %v233
  %287 = vmatpush1.bf16.msra.mxu0 %v232
  %288 = vmatprep.subr.bf16.mxu0 %v237
  %289 = vmatpush1.bf16.msra.mxu0 %v236
  %290 = vmatprep.subr.bf16.mxu0 %v241
  %291 = vmatpush1.bf16.msra.mxu0 %v240
  %292 = vmatprep.subr.bf16.mxu0 0
  %293 = vmatpush1.bf16.msra.mxu0 0
  %294 = vmatprep.subr.bf16.mxu0 0
  %295 = vmatpush1.bf16.msra.mxu0 0
  %296 = vmatprep.subr.bf16.mxu0 0
  %297 = vmatpush1.bf16.msra.mxu0 0
  %298 = vmatprep.subr.bf16.mxu0 0
  %299 = vmatpush1.bf16.msra.mxu0 0
  %300 = vmatprep.subr.bf16.mxu0 0
  %301 = vmatpush1.bf16.msra.mxu0 0
  %302 = vmatprep.subr.bf16.mxu0 0
  %303 = vmatpush1.bf16.msra.mxu0 0
  %304 = vmatprep.subr.bf16.mxu0 0
  %305 = vmatpush1.bf16.msra.mxu0 0
  %306 = vmatprep.subr.bf16.mxu0 0
  %307 = vmatpush1.bf16.msra.mxu0 0
  %308 = vmatprep.mubr.bf16.mxu0 0
  %309 = vmatmul.mubr.bf16.gmra.mrb[0].mxu0 %v108
  %v310 = vpop.f32.mrb[0].mxu0
  %v311 = vadd.f32 %v75, %v310
  %v312 = vpop.f32.mrb[0].mxu0
  %v313 = vadd.f32 %v79, %v312
  %v314 = vpop.f32.mrb[0].mxu0
  %v315 = vadd.f32 %v75, %v314
  %v316 = vpop.f32.mrb[0].mxu0
  %v317 = vadd.f32 %v79, %v316
  %318 = vmatprep.mubr.bf16.mxu0 0
  %319 = vmatmul.mubr.bf16.gmra.mrb[0].mxu0 %v109
  %v320 = vpop.f32.mrb[0].mxu0
  %v321 = vadd.f32 %v75, %v320
  %v322 = vpop.f32.mrb[0].mxu0
  %v323 = vadd.f32 %v79, %v322
  %v324 = vpop.f32.mrb[0].mxu0
  %v325 = vadd.f32 %v75, %v324
  %v326 = vpop.f32.mrb[0].mxu0
  %v327 = vadd.f32 %v79, %v326
  %328 = vmatprep.mubr.bf16.mxu0 0
  %329 = vmatmul.mubr.bf16.gmra.mrb[0].mxu0 %v110
  %v330 = vpop.f32.mrb[0].mxu0
  %v331 = vadd.f32 %v75, %v330
  %v332 = vpop.f32.mrb[0].mxu0
  %v333 = vadd.f32 %v79, %v332
  %v334 = vpop.f32.mrb[0].mxu0
  %v335 = vadd.f32 %v75, %v334
  %v336 = vpop.f32.mrb[0].mxu0
  %v337 = vadd.f32 %v79, %v336
  %338 = vmatprep.mubr.bf16.mxu0 0
  %339 = vmatmul.mubr.bf16.gmra.mrb[0].mxu0 %v111
  %v340 = vpop.f32.mrb[0].mxu0
  %v341 = vadd.f32 %v75, %v340
  %v342 = vpop.f32.mrb[0].mxu0
  %v343 = vadd.f32 %v79, %v342
  %v344 = vpop.f32.mrb[0].mxu0
  %v345 = vadd.f32 %v75, %v344
  %v346 = vpop.f32.mrb[0].mxu0
  %v347 = vadd.f32 %v79, %v346
  %348 = vdwg.mxu0
  %349 = vmatprep.subr.bf16.mxu0 %v215
  %350 = vmatpush1.bf16.msra.mxu0 %v214
  %351 = vmatprep.subr.bf16.mxu0 %v219
  %352 = vmatpush1.bf16.msra.mxu0 %v218
  %353 = vmatprep.subr.bf16.mxu0 %v223
  %354 = vmatpush1.bf16.msra.mxu0 %v222
  %355 = vmatprep.subr.bf16.mxu0 %v227
  %356 = vmatpush1.bf16.msra.mxu0 %v226
  %357 = vmatprep.subr.bf16.mxu0 %v231
  %358 = vmatpush1.bf16.msra.mxu0 %v230
  %359 = vmatprep.subr.bf16.mxu0 %v235
  %360 = vmatpush1.bf16.msra.mxu0 %v234
  %361 = vmatprep.subr.bf16.mxu0 %v239
  %362 = vmatpush1.bf16.msra.mxu0 %v238
  %363 = vmatprep.subr.bf16.mxu0 %v243
  %364 = vmatpush1.bf16.msra.mxu0 %v242
  %365 = vmatprep.subr.bf16.mxu0 0
  %366 = vmatpush1.bf16.msra.mxu0 0
  %367 = vmatprep.subr.bf16.mxu0 0
  %368 = vmatpush1.bf16.msra.mxu0 0
  %369 = vmatprep.subr.bf16.mxu0 0
  %370 = vmatpush1.bf16.msra.mxu0 0
  %371 = vmatprep.subr.bf16.mxu0 0
  %372 = vmatpush1.bf16.msra.mxu0 0
  %373 = vmatprep.subr.bf16.mxu0 0
  %374 = vmatpush1.bf16.msra.mxu0 0
  %375 = vmatprep.subr.bf16.mxu0 0
  %376 = vmatpush1.bf16.msra.mxu0 0
  %377 = vmatprep.subr.bf16.mxu0 0
  %378 = vmatpush1.bf16.msra.mxu0 0
  %379 = vmatprep.subr.bf16.mxu0 0
  %380 = vmatpush1.bf16.msra.mxu0 0
  %381 = vmatprep.mubr.bf16.mxu0 0
  %382 = vmatmul.mubr.bf16.gmra.mrb[0].mxu0 %v108
  %v383 = vpop.f32.mrb[0].mxu0
  %v384 = vadd.f32 %v83, %v383
  %v385 = vpop.f32.mrb[0].mxu0
  %v386 = vadd.f32 %v87, %v385
  %v387 = vpop.f32.mrb[0].mxu0
  %v388 = vadd.f32 %v83, %v387
  %v389 = vpop.f32.mrb[0].mxu0
  %v390 = vadd.f32 %v87, %v389
  %391 = vmatprep.mubr.bf16.mxu0 0
  %392 = vmatmul.mubr.bf16.gmra.mrb[0].mxu0 %v109
  %v393 = vpop.f32.mrb[0].mxu0
  %v394 = vadd.f32 %v83, %v393
  %v395 = vpop.f32.mrb[0].mxu0
  %v396 = vadd.f32 %v87, %v395
  %v397 = vpop.f32.mrb[0].mxu0
  %v398 = vadd.f32 %v83, %v397
  %v399 = vpop.f32.mrb[0].mxu0
  %v400 = vadd.f32 %v87, %v399
  %401 = vmatprep.mubr.bf16.mxu0 0
  %402 = vmatmul.mubr.bf16.gmra.mrb[0].mxu0 %v110
  %v403 = vpop.f32.mrb[0].mxu0
  %v404 = vadd.f32 %v83, %v403
  %v405 = vpop.f32.mrb[0].mxu0
  %v406 = vadd.f32 %v87, %v405
  %v407 = vpop.f32.mrb[0].mxu0
  %v408 = vadd.f32 %v83, %v407
  %v409 = vpop.f32.mrb[0].mxu0
  %v410 = vadd.f32 %v87, %v409
  %411 = vmatprep.mubr.bf16.mxu0 0
  %412 = vmatmul.mubr.bf16.gmra.mrb[0].mxu0 %v111
  %v413 = vpop.f32.mrb[0].mxu0
  %v414 = vadd.f32 %v83, %v413
  %v415 = vpop.f32.mrb[0].mxu0
  %v416 = vadd.f32 %v87, %v415
  %v417 = vpop.f32.mrb[0].mxu0
  %v418 = vadd.f32 %v83, %v417
  %v419 = vpop.f32.mrb[0].mxu0
  %v420 = vadd.f32 %v87, %v419
  %421 = vdwg.mxu0
  %422 = vst [vmem:[#allocation2] sm:$0xff] %v311
  %423 = vst [vmem:[#allocation2 + $0x8] sm:$0xff] %v313
  %424 = vst [vmem:[#allocation2 + $0x10] sm:$0xff] %v384
  %425 = vst [vmem:[#allocation2 + $0x18] sm:$0xff] %v386
  %426 = vst [vmem:[#allocation2 + $0x20] sm:$0xff] %v315
  %427 = vst [vmem:[#allocation2 + $0x28] sm:$0xff] %v317
  %428 = vst [vmem:[#allocation2 + $0x30] sm:$0xff] %v388
  %429 = vst [vmem:[#allocation2 + $0x38] sm:$0xff] %v390
  %430 = vst [vmem:[#allocation2 + $0x40] sm:$0xff] %v321
  %431 = vst [vmem:[#allocation2 + $0x48] sm:$0xff] %v323
  %432 = vst [vmem:[#allocation2 + $0x50] sm:$0xff] %v394
  %433 = vst [vmem:[#allocation2 + $0x58] sm:$0xff] %v396
  %434 = vst [vmem:[#allocation2 + $0x60] sm:$0xff] %v325
  %435 = vst [vmem:[#allocation2 + $0x68] sm:$0xff] %v327
  %436 = vst [vmem:[#allocation2 + $0x70] sm:$0xff] %v398
  %437 = vst [vmem:[#allocation2 + $0x78] sm:$0xff] %v400
  %438 = vst [vmem:[#allocation2 + $0x80] sm:$0xff] %v331
  %439 = vst [vmem:[#allocation2 + $0x88] sm:$0xff] %v333
  %440 = vst [vmem:[#allocation2 + $0x90] sm:$0xff] %v404
  %441 = vst [vmem:[#allocation2 + $0x98] sm:$0xff] %v406
  %442 = vst [vmem:[#allocation2 + $0xa0] sm:$0xff] %v335
  %443 = vst [vmem:[#allocation2 + $0xa8] sm:$0xff] %v337
  %444 = vst [vmem:[#allocation2 + $0xb0] sm:$0xff] %v408
  %445 = vst [vmem:[#allocation2 + $0xb8] sm:$0xff] %v410
  %446 = vst [vmem:[#allocation2 + $0xc0] sm:$0xff] %v341
  %447 = vst [vmem:[#allocation2 + $0xc8] sm:$0xff] %v343
  %448 = vst [vmem:[#allocation2 + $0xd0] sm:$0xff] %v414
  %449 = vst [vmem:[#allocation2 + $0xd8] sm:$0xff] %v416
  %450 = vst [vmem:[#allocation2 + $0xe0] sm:$0xff] %v345
  %451 = vst [vmem:[#allocation2 + $0xe8] sm:$0xff] %v347
  %452 = vst [vmem:[#allocation2 + $0xf0] sm:$0xff] %v418
  %453 = vst [vmem:[#allocation2 + $0xf8] sm:$0xff] %v420
  %v454 = vld [vmem:[%s2] sm:$0xff]
  %v455 = vld [vmem:[%s2 + $0x8] sm:$0xff]
  %v456 = vld [vmem:[%s2 + $0x10] sm:$0xff]
  %v457 = vld [vmem:[%s2 + $0x18] sm:$0xff]
  %v458 = vld [vmem:[%s2 + $0x20] sm:$0xff]
  %v459 = vld [vmem:[%s2 + $0x28] sm:$0xff]
  %v460 = vld [vmem:[%s2 + $0x30] sm:$0xff]
  %v461 = vld [vmem:[%s2 + $0x38] sm:$0xff]
  %v462 = vld [vmem:[%s2 + $0x40] sm:$0xff]
  %v463 = vld [vmem:[%s2 + $0x48] sm:$0xff]
  %v464 = vld [vmem:[%s2 + $0x50] sm:$0xff]
  %v465 = vld [vmem:[%s2 + $0x58] sm:$0xff]
  %v466 = vld [vmem:[%s2 + $0x60] sm:$0xff]
  %v467 = vld [vmem:[%s2 + $0x68] sm:$0xff]
  %v468 = vld [vmem:[%s2 + $0x70] sm:$0xff]
  %v469 = vld [vmem:[%s2 + $0x78] sm:$0xff]
  %v470 = vld [vmem:[%s2 + $0x80] sm:$0xff]
  %v471 = vld [vmem:[%s2 + $0x88] sm:$0xff]
  %v472 = vld [vmem:[%s2 + $0x90] sm:$0xff]
  %v473 = vld [vmem:[%s2 + $0x98] sm:$0xff]
  %v474 = vld [vmem:[%s2 + $0xa0] sm:$0xff]
  %v475 = vld [vmem:[%s2 + $0xa8] sm:$0xff]
  %v476 = vld [vmem:[%s2 + $0xb0] sm:$0xff]
  %v477 = vld [vmem:[%s2 + $0xb8] sm:$0xff]
  %v478 = vld [vmem:[%s2 + $0xc0] sm:$0xff]
  %v479 = vld [vmem:[%s2 + $0xc8] sm:$0xff]
  %v480 = vld [vmem:[%s2 + $0xd0] sm:$0xff]
  %v481 = vld [vmem:[%s2 + $0xd8] sm:$0xff]
  %v482 = vld [vmem:[%s2 + $0xe0] sm:$0xff]
  %v483 = vld [vmem:[%s2 + $0xe8] sm:$0xff]
  %v484 = vld [vmem:[%s2 + $0xf0] sm:$0xff]
  %v485 = vld [vmem:[%s2 + $0xf8] sm:$0xff]
  %v486 = vld [vmem:[#allocation3] sm:$0xff]
  %v487 = vld [vmem:[#allocation4] sm:$0xff]
  %s488 = smul.u32 0, 4
  %s489 = smul.addr %s488, 8
  %s490 = scalar_lea.vmem [#allocation2], %s489
  %v491 = vld [vmem:[%s490] sm:$0xff]
  %v492 = vld [vmem:[%s490 + $0x8] sm:$0xff]
  %v493 = vld [vmem:[%s490 + $0x10] sm:$0xff]
  %v494 = vld [vmem:[%s490 + $0x18] sm:$0xff]
  %v495 = vpack.c.bf16 %v486, %v486
  %v528 = vunpack.c.l.b16 %v454
  %v529 = vunpack.c.h.b16 %v454
  %v530 = vunpack.c.l.b16 %v455
  %v531 = vunpack.c.h.b16 %v455
  %v532 = vunpack.c.l.b16 %v456
  %v533 = vunpack.c.h.b16 %v456
  %v534 = vunpack.c.l.b16 %v457
  %v535 = vunpack.c.h.b16 %v457
  %v536 = vunpack.c.l.b16 %v458
  %v537 = vunpack.c.h.b16 %v458
  %v538 = vunpack.c.l.b16 %v459
  %v539 = vunpack.c.h.b16 %v459
  %v540 = vunpack.c.l.b16 %v460
  %v541 = vunpack.c.h.b16 %v460
  %v542 = vunpack.c.l.b16 %v461
  %v543 = vunpack.c.h.b16 %v461
  %v544 = vunpack.c.l.b16 %v462
  %v545 = vunpack.c.h.b16 %v462
  %v546 = vunpack.c.l.b16 %v463
  %v547 = vunpack.c.h.b16 %v463
  %v548 = vunpack.c.l.b16 %v464
  %v549 = vunpack.c.h.b16 %v464
  %v550 = vunpack.c.l.b16 %v465
  %v551 = vunpack.c.h.b16 %v465
  %v552 = vunpack.c.l.b16 %v466
  %v553 = vunpack.c.h.b16 %v466
  %v554 = vunpack.c.l.b16 %v467
  %v555 = vunpack.c.h.b16 %v467
  %v556 = vunpack.c.l.b16 %v468
  %v557 = vunpack.c.h.b16 %v468
  %v558 = vunpack.c.l.b16 %v469
  %v559 = vunpack.c.h.b16 %v469
  %v560 = vunpack.c.l.b16 %v470
  %v561 = vunpack.c.h.b16 %v470
  %v562 = vunpack.c.l.b16 %v471
  %v563 = vunpack.c.h.b16 %v471
  %v564 = vunpack.c.l.b16 %v472
  %v565 = vunpack.c.h.b16 %v472
  %v566 = vunpack.c.l.b16 %v473
  %v567 = vunpack.c.h.b16 %v473
  %v568 = vunpack.c.l.b16 %v474
  %v569 = vunpack.c.h.b16 %v474
  %v570 = vunpack.c.l.b16 %v475
  %v571 = vunpack.c.h.b16 %v475
  %v572 = vunpack.c.l.b16 %v476
  %v573 = vunpack.c.h.b16 %v476
  %v574 = vunpack.c.l.b16 %v477
  %v575 = vunpack.c.h.b16 %v477
  %v576 = vunpack.c.l.b16 %v478
  %v577 = vunpack.c.h.b16 %v478
  %v578 = vunpack.c.l.b16 %v479
  %v579 = vunpack.c.h.b16 %v479
  %v580 = vunpack.c.l.b16 %v480
  %v581 = vunpack.c.h.b16 %v480
  %v582 = vunpack.c.l.b16 %v481
  %v583 = vunpack.c.h.b16 %v481
  %v584 = vunpack.c.l.b16 %v482
  %v585 = vunpack.c.h.b16 %v482
  %v586 = vunpack.c.l.b16 %v483
  %v587 = vunpack.c.h.b16 %v483
  %v588 = vunpack.c.l.b16 %v484
  %v589 = vunpack.c.h.b16 %v484
  %v590 = vunpack.c.l.b16 %v485
  %v591 = vunpack.c.h.b16 %v485
  %v592 = vpack.c.b16 %v532, %v528
  %v593 = vpack.c.b16 %v533, %v529
  %v594 = vpack.c.b16 %v534, %v530
  %v595 = vpack.c.b16 %v535, %v531
  %v596 = vpack.c.b16 %v540, %v536
  %v597 = vpack.c.b16 %v541, %v537
  %v598 = vpack.c.b16 %v542, %v538
  %v599 = vpack.c.b16 %v543, %v539
  %v600 = vpack.c.b16 %v548, %v544
  %v601 = vpack.c.b16 %v549, %v545
  %v602 = vpack.c.b16 %v550, %v546
  %v603 = vpack.c.b16 %v551, %v547
  %v604 = vpack.c.b16 %v556, %v552
  %v605 = vpack.c.b16 %v557, %v553
  %v606 = vpack.c.b16 %v558, %v554
  %v607 = vpack.c.b16 %v559, %v555
  %v608 = vpack.c.b16 %v564, %v560
  %v609 = vpack.c.b16 %v565, %v561
  %v610 = vpack.c.b16 %v566, %v562
  %v611 = vpack.c.b16 %v567, %v563
  %v612 = vpack.c.b16 %v572, %v568
  %v613 = vpack.c.b16 %v573, %v569
  %v614 = vpack.c.b16 %v574, %v570
  %v615 = vpack.c.b16 %v575, %v571
  %v616 = vpack.c.b16 %v580, %v576
  %v617 = vpack.c.b16 %v581, %v577
  %v618 = vpack.c.b16 %v582, %v578
  %v619 = vpack.c.b16 %v583, %v579
  %v620 = vpack.c.b16 %v588, %v584
  %v621 = vpack.c.b16 %v589, %v585
  %v622 = vpack.c.b16 %v590, %v586
  %v623 = vpack.c.b16 %v591, %v587
  %656 = vmatprep.subr.bf16.mxu0 %v593
  %657 = vmatpush1.bf16.msra.mxu0 %v592
  %658 = vmatprep.subr.bf16.mxu0 %v597
  %659 = vmatpush1.bf16.msra.mxu0 %v596
  %660 = vmatprep.subr.bf16.mxu0 %v601
  %661 = vmatpush1.bf16.msra.mxu0 %v600
  %662 = vmatprep.subr.bf16.mxu0 %v605
  %663 = vmatpush1.bf16.msra.mxu0 %v604
  %664 = vmatprep.subr.bf16.mxu0 %v609
  %665 = vmatpush1.bf16.msra.mxu0 %v608
  %666 = vmatprep.subr.bf16.mxu0 %v613
  %667 = vmatpush1.bf16.msra.mxu0 %v612
  %668 = vmatprep.subr.bf16.mxu0 %v617
  %669 = vmatpush1.bf16.msra.mxu0 %v616
  %670 = vmatprep.subr.bf16.mxu0 %v621
  %671 = vmatpush1.bf16.msra.mxu0 %v620
  %672 = vmatprep.subr.bf16.mxu0 0
  %673 = vmatpush1.bf16.msra.mxu0 0
  %674 = vmatprep.subr.bf16.mxu0 0
  %675 = vmatpush1.bf16.msra.mxu0 0
  %676 = vmatprep.subr.bf16.mxu0 0
  %677 = vmatpush1.bf16.msra.mxu0 0
  %678 = vmatprep.subr.bf16.mxu0 0
  %679 = vmatpush1.bf16.msra.mxu0 0
  %680 = vmatprep.subr.bf16.mxu0 0
  %681 = vmatpush1.bf16.msra.mxu0 0
  %682 = vmatprep.subr.bf16.mxu0 0
  %683 = vmatpush1.bf16.msra.mxu0 0
  %684 = vmatprep.subr.bf16.mxu0 0
  %685 = vmatpush1.bf16.msra.mxu0 0
  %686 = vmatprep.subr.bf16.mxu0 0
  %687 = vmatpush1.bf16.msra.mxu0 0
  %688 = vmatprep.mubr.bf16.mxu0 0
  %689 = vmatmul.mubr.bf16.gmra.mrb[0].mxu0 %v495
  %v690 = vpop.f32.mrb[0].mxu0
  %v691 = vadd.f32 0.0, %v690
  %v692 = vpop.f32.mrb[0].mxu0
  %v693 = vadd.f32 0.0, %v692
  %v694 = vpop.f32.mrb[0].mxu0
  %v695 = vpop.f32.mrb[0].mxu0
  %696 = vdwg.mxu0
  %697 = vmatprep.subr.bf16.mxu0 %v595
  %698 = vmatpush1.bf16.msra.mxu0 %v594
  %699 = vmatprep.subr.bf16.mxu0 %v599
  %700 = vmatpush1.bf16.msra.mxu0 %v598
  %701 = vmatprep.subr.bf16.mxu0 %v603
  %702 = vmatpush1.bf16.msra.mxu0 %v602
  %703 = vmatprep.subr.bf16.mxu0 %v607
  %704 = vmatpush1.bf16.msra.mxu0 %v606
  %705 = vmatprep.subr.bf16.mxu0 %v611
  %706 = vmatpush1.bf16.msra.mxu0 %v610
  %707 = vmatprep.subr.bf16.mxu0 %v615
  %708 = vmatpush1.bf16.msra.mxu0 %v614
  %709 = vmatprep.subr.bf16.mxu0 %v619
  %710 = vmatpush1.bf16.msra.mxu0 %v618
  %711 = vmatprep.subr.bf16.mxu0 %v623
  %712 = vmatpush1.bf16.msra.mxu0 %v622
  %713 = vmatprep.subr.bf16.mxu0 0
  %714 = vmatpush1.bf16.msra.mxu0 0
  %715 = vmatprep.subr.bf16.mxu0 0
  %716 = vmatpush1.bf16.msra.mxu0 0
  %717 = vmatprep.subr.bf16.mxu0 0
  %718 = vmatpush1.bf16.msra.mxu0 0
  %719 = vmatprep.subr.bf16.mxu0 0
  %720 = vmatpush1.bf16.msra.mxu0 0
  %721 = vmatprep.subr.bf16.mxu0 0
  %722 = vmatpush1.bf16.msra.mxu0 0
  %723 = vmatprep.subr.bf16.mxu0 0
  %724 = vmatpush1.bf16.msra.mxu0 0
  %725 = vmatprep.subr.bf16.mxu0 0
  %726 = vmatpush1.bf16.msra.mxu0 0
  %727 = vmatprep.subr.bf16.mxu0 0
  %728 = vmatpush1.bf16.msra.mxu0 0
  %729 = vmatprep.mubr.bf16.mxu0 0
  %730 = vmatmul.mubr.bf16.gmra.mrb[0].mxu0 %v495
  %v731 = vpop.f32.mrb[0].mxu0
  %v732 = vadd.f32 0.0, %v731
  %v733 = vpop.f32.mrb[0].mxu0
  %v734 = vadd.f32 0.0, %v733
  %v735 = vpop.f32.mrb[0].mxu0
  %v736 = vpop.f32.mrb[0].mxu0
  %737 = vdwg.mxu0
  %v738 = vadd.f32 %v491, %v691
  %v739 = vadd.f32 %v492, %v693
  %v740 = vadd.f32 %v493, %v732
  %v741 = vadd.f32 %v494, %v734
  %v742 = vmul.f32 %v738, 0.5
  %v743 = vtanh.pop %v742
  %v744 = vmul.f32 %v743, 0.5
  %v745 = vadd.f32 %v744, 0.5
  %v746 = vmul.f32 %v739, 0.5
  %v747 = vtanh.pop %v746
  %v748 = vmul.f32 %v747, 0.5
  %v749 = vadd.f32 %v748, 0.5
  %v750 = vtanh.pop %v740
  %v751 = vmul.f32 %v741, 0.5
  %v752 = vtanh.pop %v751
  %v753 = vmul.f32 %v752, 0.5
  %v754 = vadd.f32 %v753, 0.5
  %v755 = vmul.f32 %v749, %v487
  %v756 = vmul.f32 %v745, %v750
  %v757 = vadd.f32 %v755, %v756
  %v758 = vtanh.pop %v757
  %v759 = vmul.f32 %v754, %v758
  %s760 = smul.u32 1, 4
  %s761 = smul.addr %s760, 8
  %s762 = scalar_lea.vmem [#allocation2], %s761
  %v763 = vld [vmem:[%s762] sm:$0xff]
  %v764 = vld [vmem:[%s762 + $0x8] sm:$0xff]
  %v765 = vld [vmem:[%s762 + $0x10] sm:$0xff]
  %v766 = vld [vmem:[%s762 + $0x18] sm:$0xff]
  %v767 = vpack.c.bf16 %v759, %v759
  %768 = vmatprep.subr.bf16.mxu0 %v593
  %769 = vmatpush1.bf16.msra.mxu0 %v592
  %770 = vmatprep.subr.bf16.mxu0 %v597
  %771 = vmatpush1.bf16.msra.mxu0 %v596
  %772 = vmatprep.subr.bf16.mxu0 %v601
  %773 = vmatpush1.bf16.msra.mxu0 %v600
  %774 = vmatprep.subr.bf16.mxu0 %v605
  %775 = vmatpush1.bf16.msra.mxu0 %v604
  %776 = vmatprep.subr.bf16.mxu0 %v609
  %777 = vmatpush1.bf16.msra.mxu0 %v608
  %778 = vmatprep.subr.bf16.mxu0 %v613
  %779 = vmatpush1.bf16.msra.mxu0 %v612
  %780 = vmatprep.subr.bf16.mxu0 %v617
  %781 = vmatpush1.bf16.msra.mxu0 %v616
  %782 = vmatprep.subr.bf16.mxu0 %v621
  %783 = vmatpush1.bf16.msra.mxu0 %v620
  %784 = vmatprep.subr.bf16.mxu0 0
  %785 = vmatpush1.bf16.msra.mxu0 0
  %786 = vmatprep.subr.bf16.mxu0 0
  %787 = vmatpush1.bf16.msra.mxu0 0
  %788 = vmatprep.subr.bf16.mxu0 0
  %789 = vmatpush1.bf16.msra.mxu0 0
  %790 = vmatprep.subr.bf16.mxu0 0
  %791 = vmatpush1.bf16.msra.mxu0 0
  %792 = vmatprep.subr.bf16.mxu0 0
  %793 = vmatpush1.bf16.msra.mxu0 0
  %794 = vmatprep.subr.bf16.mxu0 0
  %795 = vmatpush1.bf16.msra.mxu0 0
  %796 = vmatprep.subr.bf16.mxu0 0
  %797 = vmatpush1.bf16.msra.mxu0 0
  %798 = vmatprep.subr.bf16.mxu0 0
  %799 = vmatpush1.bf16.msra.mxu0 0
  %800 = vmatprep.mubr.bf16.mxu0 0
  %801 = vmatmul.mubr.bf16.gmra.mrb[0].mxu0 %v767
  %v802 = vpop.f32.mrb[0].mxu0
  %v803 = vadd.f32 0.0, %v802
  %v804 = vpop.f32.mrb[0].mxu0
  %v805 = vadd.f32 0.0, %v804
  %v806 = vpop.f32.mrb[0].mxu0
  %v807 = vpop.f32.mrb[0].mxu0
  %808 = vdwg.mxu0
  %809 = vmatprep.subr.bf16.mxu0 %v595
  %810 = vmatpush1.bf16.msra.mxu0 %v594
  %811 = vmatprep.subr.bf16.mxu0 %v599
  %812 = vmatpush1.bf16.msra.mxu0 %v598
  %813 = vmatprep.subr.bf16.mxu0 %v603
  %814 = vmatpush1.bf16.msra.mxu0 %v602
  %815 = vmatprep.subr.bf16.mxu0 %v607
  %816 = vmatpush1.bf16.msra.mxu0 %v606
  %817 = vmatprep.subr.bf16.mxu0 %v611
  %818 = vmatpush1.bf16.msra.mxu0 %v610
  %819 = vmatprep.subr.bf16.mxu0 %v615
  %820 = vmatpush1.bf16.msra.mxu0 %v614
  %821 = vmatprep.subr.bf16.mxu0 %v619
  %822 = vmatpush1.bf16.msra.mxu0 %v618
  %823 = vmatprep.subr.bf16.mxu0 %v623
  %824 = vmatpush1.bf16.msra.mxu0 %v622
  %825 = vmatprep.subr.bf16.mxu0 0
  %826 = vmatpush1.bf16.msra.mxu0 0
  %827 = vmatprep.subr.bf16.mxu0 0
  %828 = vmatpush1.bf16.msra.mxu0 0
  %829 = vmatprep.subr.bf16.mxu0 0
  %830 = vmatpush1.bf16.msra.mxu0 0
  %831 = vmatprep.subr.bf16.mxu0 0
  %832 = vmatpush1.bf16.msra.mxu0 0
  %833 = vmatprep.subr.bf16.mxu0 0
  %834 = vmatpush1.bf16.msra.mxu0 0
  %835 = vmatprep.subr.bf16.mxu0 0
  %836 = vmatpush1.bf16.msra.mxu0 0
  %837 = vmatprep.subr.bf16.mxu0 0
  %838 = vmatpush1.bf16.msra.mxu0 0
  %839 = vmatprep.subr.bf16.mxu0 0
  %840 = vmatpush1.bf16.msra.mxu0 0
  %841 = vmatprep.mubr.bf16.mxu0 0
  %842 = vmatmul.mubr.bf16.gmra.mrb[0].mxu0 %v767
  %v843 = vpop.f32.mrb[0].mxu0
  %v844 = vadd.f32 0.0, %v843
  %v845 = vpop.f32.mrb[0].mxu0
  %v846 = vadd.f32 0.0, %v845
  %v847 = vpop.f32.mrb[0].mxu0
  %v848 = vpop.f32.mrb[0].mxu0
  %849 = vdwg.mxu0
  %v850 = vadd.f32 %v763, %v803
  %v851 = vadd.f32 %v764, %v805
  %v852 = vadd.f32 %v765, %v844
  %v853 = vadd.f32 %v766, %v846
  %v854 = vmul.f32 %v850, 0.5
  %v855 = vtanh.pop %v854
  %v856 = vmul.f32 %v855, 0.5
  %v857 = vadd.f32 %v856, 0.5
  %v858 = vmul.f32 %v851, 0.5
  %v859 = vtanh.pop %v858
  %v860 = vmul.f32 %v859, 0.5
  %v861 = vadd.f32 %v860, 0.5
  %v862 = vtanh.pop %v852
  %v863 = vmul.f32 %v853, 0.5
  %v864 = vtanh.pop %v863
  %v865 = vmul.f32 %v864, 0.5
  %v866 = vadd.f32 %v865, 0.5
  %v867 = vmul.f32 %v861, %v757
  %v868 = vmul.f32 %v857, %v862
  %v869 = vadd.f32 %v867, %v868
  %v870 = vtanh.pop %v869
  %v871 = vmul.f32 %v866, %v870
  %s872 = smul.u32 2, 4
  %s873 = smul.addr %s872, 8
  %s874 = scalar_lea.vmem [#allocation2], %s873
  %v875 = vld [vmem:[%s874] sm:$0xff]
  %v876 = vld [vmem:[%s874 + $0x8] sm:$0xff]
  %v877 = vld [vmem:[%s874 + $0x10] sm:$0xff]
  %v878 = vld [vmem:[%s874 + $0x18] sm:$0xff]
  %v879 = vpack.c.bf16 %v871, %v871
  %880 = vmatprep.subr.bf16.mxu0 %v593
  %881 = vmatpush1.bf16.msra.mxu0 %v592
  %882 = vmatprep.subr.bf16.mxu0 %v597
  %883 = vmatpush1.bf16.msra.mxu0 %v596
  %884 = vmatprep.subr.bf16.mxu0 %v601
  %885 = vmatpush1.bf16.msra.mxu0 %v600
  %886 = vmatprep.subr.bf16.mxu0 %v605
  %887 = vmatpush1.bf16.msra.mxu0 %v604
  %888 = vmatprep.subr.bf16.mxu0 %v609
  %889 = vmatpush1.bf16.msra.mxu0 %v608
  %890 = vmatprep.subr.bf16.mxu0 %v613
  %891 = vmatpush1.bf16.msra.mxu0 %v612
  %892 = vmatprep.subr.bf16.mxu0 %v617
  %893 = vmatpush1.bf16.msra.mxu0 %v616
  %894 = vmatprep.subr.bf16.mxu0 %v621
  %895 = vmatpush1.bf16.msra.mxu0 %v620
  %896 = vmatprep.subr.bf16.mxu0 0
  %897 = vmatpush1.bf16.msra.mxu0 0
  %898 = vmatprep.subr.bf16.mxu0 0
  %899 = vmatpush1.bf16.msra.mxu0 0
  %900 = vmatprep.subr.bf16.mxu0 0
  %901 = vmatpush1.bf16.msra.mxu0 0
  %902 = vmatprep.subr.bf16.mxu0 0
  %903 = vmatpush1.bf16.msra.mxu0 0
  %904 = vmatprep.subr.bf16.mxu0 0
  %905 = vmatpush1.bf16.msra.mxu0 0
  %906 = vmatprep.subr.bf16.mxu0 0
  %907 = vmatpush1.bf16.msra.mxu0 0
  %908 = vmatprep.subr.bf16.mxu0 0
  %909 = vmatpush1.bf16.msra.mxu0 0
  %910 = vmatprep.subr.bf16.mxu0 0
  %911 = vmatpush1.bf16.msra.mxu0 0
  %912 = vmatprep.mubr.bf16.mxu0 0
  %913 = vmatmul.mubr.bf16.gmra.mrb[0].mxu0 %v879
  %v914 = vpop.f32.mrb[0].mxu0
  %v915 = vadd.f32 0.0, %v914
  %v916 = vpop.f32.mrb[0].mxu0
  %v917 = vadd.f32 0.0, %v916
  %v918 = vpop.f32.mrb[0].mxu0
  %v919 = vpop.f32.mrb[0].mxu0
  %920 = vdwg.mxu0
  %921 = vmatprep.subr.bf16.mxu0 %v595
  %922 = vmatpush1.bf16.msra.mxu0 %v594
  %923 = vmatprep.subr.bf16.mxu0 %v599
  %924 = vmatpush1.bf16.msra.mxu0 %v598
  %925 = vmatprep.subr.bf16.mxu0 %v603
  %926 = vmatpush1.bf16.msra.mxu0 %v602
  %927 = vmatprep.subr.bf16.mxu0 %v607
  %928 = vmatpush1.bf16.msra.mxu0 %v606
  %929 = vmatprep.subr.bf16.mxu0 %v611
  %930 = vmatpush1.bf16.msra.mxu0 %v610
  %931 = vmatprep.subr.bf16.mxu0 %v615
  %932 = vmatpush1.bf16.msra.mxu0 %v614
  %933 = vmatprep.subr.bf16.mxu0 %v619
  %934 = vmatpush1.bf16.msra.mxu0 %v618
  %935 = vmatprep.subr.bf16.mxu0 %v623
  %936 = vmatpush1.bf16.msra.mxu0 %v622
  %937 = vmatprep.subr.bf16.mxu0 0
  %938 = vmatpush1.bf16.msra.mxu0 0
  %939 = vmatprep.subr.bf16.mxu0 0
  %940 = vmatpush1.bf16.msra.mxu0 0
  %941 = vmatprep.subr.bf16.mxu0 0
  %942 = vmatpush1.bf16.msra.mxu0 0
  %943 = vmatprep.subr.bf16.mxu0 0
  %944 = vmatpush1.bf16.msra.mxu0 0
  %945 = vmatprep.subr.bf16.mxu0 0
  %946 = vmatpush1.bf16.msra.mxu0 0
  %947 = vmatprep.subr.bf16.mxu0 0
  %948 = vmatpush1.bf16.msra.mxu0 0
  %949 = vmatprep.subr.bf16.mxu0 0
  %950 = vmatpush1.bf16.msra.mxu0 0
  %951 = vmatprep.subr.bf16.mxu0 0
  %952 = vmatpush1.bf16.msra.mxu0 0
  %953 = vmatprep.mubr.bf16.mxu0 0
  %954 = vmatmul.mubr.bf16.gmra.mrb[0].mxu0 %v879
  %v955 = vpop.f32.mrb[0].mxu0
  %v956 = vadd.f32 0.0, %v955
  %v957 = vpop.f32.mrb[0].mxu0
  %v958 = vadd.f32 0.0, %v957
  %v959 = vpop.f32.mrb[0].mxu0
  %v960 = vpop.f32.mrb[0].mxu0
  %961 = vdwg.mxu0
  %v962 = vadd.f32 %v875, %v915
  %v963 = vadd.f32 %v876, %v917
  %v964 = vadd.f32 %v877, %v956
  %v965 = vadd.f32 %v878, %v958
  %v966 = vmul.f32 %v962, 0.5
  %v967 = vtanh.pop %v966
  %v968 = vmul.f32 %v967, 0.5
  %v969 = vadd.f32 %v968, 0.5
  %v970 = vmul.f32 %v963, 0.5
  %v971 = vtanh.pop %v970
  %v972 = vmul.f32 %v971, 0.5
  %v973 = vadd.f32 %v972, 0.5
  %v974 = vtanh.pop %v964
  %v975 = vmul.f32 %v965, 0.5
  %v976 = vtanh.pop %v975
  %v977 = vmul.f32 %v976, 0.5
  %v978 = vadd.f32 %v977, 0.5
  %v979 = vmul.f32 %v973, %v869
  %v980 = vmul.f32 %v969, %v974
  %v981 = vadd.f32 %v979, %v980
  %v982 = vtanh.pop %v981
  %v983 = vmul.f32 %v978, %v982
  %s984 = smul.u32 3, 4
  %s985 = smul.addr %s984, 8
  %s986 = scalar_lea.vmem [#allocation2], %s985
  %v987 = vld [vmem:[%s986] sm:$0xff]
  %v988 = vld [vmem:[%s986 + $0x8] sm:$0xff]
  %v989 = vld [vmem:[%s986 + $0x10] sm:$0xff]
  %v990 = vld [vmem:[%s986 + $0x18] sm:$0xff]
  %v991 = vpack.c.bf16 %v983, %v983
  %992 = vmatprep.subr.bf16.mxu0 %v593
  %993 = vmatpush1.bf16.msra.mxu0 %v592
  %994 = vmatprep.subr.bf16.mxu0 %v597
  %995 = vmatpush1.bf16.msra.mxu0 %v596
  %996 = vmatprep.subr.bf16.mxu0 %v601
  %997 = vmatpush1.bf16.msra.mxu0 %v600
  %998 = vmatprep.subr.bf16.mxu0 %v605
  %999 = vmatpush1.bf16.msra.mxu0 %v604
  %1000 = vmatprep.subr.bf16.mxu0 %v609
  %1001 = vmatpush1.bf16.msra.mxu0 %v608
  %1002 = vmatprep.subr.bf16.mxu0 %v613
  %1003 = vmatpush1.bf16.msra.mxu0 %v612
  %1004 = vmatprep.subr.bf16.mxu0 %v617
  %1005 = vmatpush1.bf16.msra.mxu0 %v616
  %1006 = vmatprep.subr.bf16.mxu0 %v621
  %1007 = vmatpush1.bf16.msra.mxu0 %v620
  %1008 = vmatprep.subr.bf16.mxu0 0
  %1009 = vmatpush1.bf16.msra.mxu0 0
  %1010 = vmatprep.subr.bf16.mxu0 0
  %1011 = vmatpush1.bf16.msra.mxu0 0
  %1012 = vmatprep.subr.bf16.mxu0 0
  %1013 = vmatpush1.bf16.msra.mxu0 0
  %1014 = vmatprep.subr.bf16.mxu0 0
  %1015 = vmatpush1.bf16.msra.mxu0 0
  %1016 = vmatprep.subr.bf16.mxu0 0
  %1017 = vmatpush1.bf16.msra.mxu0 0
  %1018 = vmatprep.subr.bf16.mxu0 0
  %1019 = vmatpush1.bf16.msra.mxu0 0
  %1020 = vmatprep.subr.bf16.mxu0 0
  %1021 = vmatpush1.bf16.msra.mxu0 0
  %1022 = vmatprep.subr.bf16.mxu0 0
  %1023 = vmatpush1.bf16.msra.mxu0 0
  %1024 = vmatprep.mubr.bf16.mxu0 0
  %1025 = vmatmul.mubr.bf16.gmra.mrb[0].mxu0 %v991
  %v1026 = vpop.f32.mrb[0].mxu0
  %v1027 = vadd.f32 0.0, %v1026
  %v1028 = vpop.f32.mrb[0].mxu0
  %v1029 = vadd.f32 0.0, %v1028
  %v1030 = vpop.f32.mrb[0].mxu0
  %v1031 = vpop.f32.mrb[0].mxu0
  %1032 = vdwg.mxu0
  %1033 = vmatprep.subr.bf16.mxu0 %v595
  %1034 = vmatpush1.bf16.msra.mxu0 %v594
  %1035 = vmatprep.subr.bf16.mxu0 %v599
  %1036 = vmatpush1.bf16.msra.mxu0 %v598
  %1037 = vmatprep.subr.bf16.mxu0 %v603
  %1038 = vmatpush1.bf16.msra.mxu0 %v602
  %1039 = vmatprep.subr.bf16.mxu0 %v607
  %1040 = vmatpush1.bf16.msra.mxu0 %v606
  %1041 = vmatprep.subr.bf16.mxu0 %v611
  %1042 = vmatpush1.bf16.msra.mxu0 %v610
  %1043 = vmatprep.subr.bf16.mxu0 %v615
  %1044 = vmatpush1.bf16.msra.mxu0 %v614
  %1045 = vmatprep.subr.bf16.mxu0 %v619
  %1046 = vmatpush1.bf16.msra.mxu0 %v618
  %1047 = vmatprep.subr.bf16.mxu0 %v623
  %1048 = vmatpush1.bf16.msra.mxu0 %v622
  %1049 = vmatprep.subr.bf16.mxu0 0
  %1050 = vmatpush1.bf16.msra.mxu0 0
  %1051 = vmatprep.subr.bf16.mxu0 0
  %1052 = vmatpush1.bf16.msra.mxu0 0
  %1053 = vmatprep.subr.bf16.mxu0 0
  %1054 = vmatpush1.bf16.msra.mxu0 0
  %1055 = vmatprep.subr.bf16.mxu0 0
  %1056 = vmatpush1.bf16.msra.mxu0 0
  %1057 = vmatprep.subr.bf16.mxu0 0
  %1058 = vmatpush1.bf16.msra.mxu0 0
  %1059 = vmatprep.subr.bf16.mxu0 0
  %1060 = vmatpush1.bf16.msra.mxu0 0
  %1061 = vmatprep.subr.bf16.mxu0 0
  %1062 = vmatpush1.bf16.msra.mxu0 0
  %1063 = vmatprep.subr.bf16.mxu0 0
  %1064 = vmatpush1.bf16.msra.mxu0 0
  %1065 = vmatprep.mubr.bf16.mxu0 0
  %1066 = vmatmul.mubr.bf16.gmra.mrb[0].mxu0 %v991
  %v1067 = vpop.f32.mrb[0].mxu0
  %v1068 = vadd.f32 0.0, %v1067
  %v1069 = vpop.f32.mrb[0].mxu0
  %v1070 = vadd.f32 0.0, %v1069
  %v1071 = vpop.f32.mrb[0].mxu0
  %v1072 = vpop.f32.mrb[0].mxu0
  %1073 = vdwg.mxu0
  %v1074 = vadd.f32 %v987, %v1027
  %v1075 = vadd.f32 %v988, %v1029
  %v1076 = vadd.f32 %v989, %v1068
  %v1077 = vadd.f32 %v990, %v1070
  %v1078 = vmul.f32 %v1074, 0.5
  %v1079 = vtanh.pop %v1078
  %v1080 = vmul.f32 %v1079, 0.5
  %v1081 = vadd.f32 %v1080, 0.5
  %v1082 = vmul.f32 %v1075, 0.5
  %v1083 = vtanh.pop %v1082
  %v1084 = vmul.f32 %v1083, 0.5
  %v1085 = vadd.f32 %v1084, 0.5
  %v1086 = vtanh.pop %v1076
  %v1087 = vmul.f32 %v1077, 0.5
  %v1088 = vtanh.pop %v1087
  %v1089 = vmul.f32 %v1088, 0.5
  %v1090 = vadd.f32 %v1089, 0.5
  %v1091 = vmul.f32 %v1085, %v981
  %v1092 = vmul.f32 %v1081, %v1086
  %v1093 = vadd.f32 %v1091, %v1092
  %v1094 = vtanh.pop %v1093
  %v1095 = vmul.f32 %v1090, %v1094
  %s1096 = smul.u32 4, 4
  %s1097 = smul.addr %s1096, 8
  %s1098 = scalar_lea.vmem [#allocation2], %s1097
  %v1099 = vld [vmem:[%s1098] sm:$0xff]
  %v1100 = vld [vmem:[%s1098 + $0x8] sm:$0xff]
  %v1101 = vld [vmem:[%s1098 + $0x10] sm:$0xff]
  %v1102 = vld [vmem:[%s1098 + $0x18] sm:$0xff]
  %v1103 = vpack.c.bf16 %v1095, %v1095
  %1104 = vmatprep.subr.bf16.mxu0 %v593
  %1105 = vmatpush1.bf16.msra.mxu0 %v592
  %1106 = vmatprep.subr.bf16.mxu0 %v597
  %1107 = vmatpush1.bf16.msra.mxu0 %v596
  %1108 = vmatprep.subr.bf16.mxu0 %v601
  %1109 = vmatpush1.bf16.msra.mxu0 %v600
  %1110 = vmatprep.subr.bf16.mxu0 %v605
  %1111 = vmatpush1.bf16.msra.mxu0 %v604
  %1112 = vmatprep.subr.bf16.mxu0 %v609
  %1113 = vmatpush1.bf16.msra.mxu0 %v608
  %1114 = vmatprep.subr.bf16.mxu0 %v613
  %1115 = vmatpush1.bf16.msra.mxu0 %v612
  %1116 = vmatprep.subr.bf16.mxu0 %v617
  %1117 = vmatpush1.bf16.msra.mxu0 %v616
  %1118 = vmatprep.subr.bf16.mxu0 %v621
  %1119 = vmatpush1.bf16.msra.mxu0 %v620
  %1120 = vmatprep.subr.bf16.mxu0 0
  %1121 = vmatpush1.bf16.msra.mxu0 0
  %1122 = vmatprep.subr.bf16.mxu0 0
  %1123 = vmatpush1.bf16.msra.mxu0 0
  %1124 = vmatprep.subr.bf16.mxu0 0
  %1125 = vmatpush1.bf16.msra.mxu0 0
  %1126 = vmatprep.subr.bf16.mxu0 0
  %1127 = vmatpush1.bf16.msra.mxu0 0
  %1128 = vmatprep.subr.bf16.mxu0 0
  %1129 = vmatpush1.bf16.msra.mxu0 0
  %1130 = vmatprep.subr.bf16.mxu0 0
  %1131 = vmatpush1.bf16.msra.mxu0 0
  %1132 = vmatprep.subr.bf16.mxu0 0
  %1133 = vmatpush1.bf16.msra.mxu0 0
  %1134 = vmatprep.subr.bf16.mxu0 0
  %1135 = vmatpush1.bf16.msra.mxu0 0
  %1136 = vmatprep.mubr.bf16.mxu0 0
  %1137 = vmatmul.mubr.bf16.gmra.mrb[0].mxu0 %v1103
  %v1138 = vpop.f32.mrb[0].mxu0
  %v1139 = vadd.f32 0.0, %v1138
  %v1140 = vpop.f32.mrb[0].mxu0
  %v1141 = vadd.f32 0.0, %v1140
  %v1142 = vpop.f32.mrb[0].mxu0
  %v1143 = vpop.f32.mrb[0].mxu0
  %1144 = vdwg.mxu0
  %1145 = vmatprep.subr.bf16.mxu0 %v595
  %1146 = vmatpush1.bf16.msra.mxu0 %v594
  %1147 = vmatprep.subr.bf16.mxu0 %v599
  %1148 = vmatpush1.bf16.msra.mxu0 %v598
  %1149 = vmatprep.subr.bf16.mxu0 %v603
  %1150 = vmatpush1.bf16.msra.mxu0 %v602
  %1151 = vmatprep.subr.bf16.mxu0 %v607
  %1152 = vmatpush1.bf16.msra.mxu0 %v606
  %1153 = vmatprep.subr.bf16.mxu0 %v611
  %1154 = vmatpush1.bf16.msra.mxu0 %v610
  %1155 = vmatprep.subr.bf16.mxu0 %v615
  %1156 = vmatpush1.bf16.msra.mxu0 %v614
  %1157 = vmatprep.subr.bf16.mxu0 %v619
  %1158 = vmatpush1.bf16.msra.mxu0 %v618
  %1159 = vmatprep.subr.bf16.mxu0 %v623
  %1160 = vmatpush1.bf16.msra.mxu0 %v622
  %1161 = vmatprep.subr.bf16.mxu0 0
  %1162 = vmatpush1.bf16.msra.mxu0 0
  %1163 = vmatprep.subr.bf16.mxu0 0
  %1164 = vmatpush1.bf16.msra.mxu0 0
  %1165 = vmatprep.subr.bf16.mxu0 0
  %1166 = vmatpush1.bf16.msra.mxu0 0
  %1167 = vmatprep.subr.bf16.mxu0 0
  %1168 = vmatpush1.bf16.msra.mxu0 0
  %1169 = vmatprep.subr.bf16.mxu0 0
  %1170 = vmatpush1.bf16.msra.mxu0 0
  %1171 = vmatprep.subr.bf16.mxu0 0
  %1172 = vmatpush1.bf16.msra.mxu0 0
  %1173 = vmatprep.subr.bf16.mxu0 0
  %1174 = vmatpush1.bf16.msra.mxu0 0
  %1175 = vmatprep.subr.bf16.mxu0 0
  %1176 = vmatpush1.bf16.msra.mxu0 0
  %1177 = vmatprep.mubr.bf16.mxu0 0
  %1178 = vmatmul.mubr.bf16.gmra.mrb[0].mxu0 %v1103
  %v1179 = vpop.f32.mrb[0].mxu0
  %v1180 = vadd.f32 0.0, %v1179
  %v1181 = vpop.f32.mrb[0].mxu0
  %v1182 = vadd.f32 0.0, %v1181
  %v1183 = vpop.f32.mrb[0].mxu0
  %v1184 = vpop.f32.mrb[0].mxu0
  %1185 = vdwg.mxu0
  %v1186 = vadd.f32 %v1099, %v1139
  %v1187 = vadd.f32 %v1100, %v1141
  %v1188 = vadd.f32 %v1101, %v1180
  %v1189 = vadd.f32 %v1102, %v1182
  %v1190 = vmul.f32 %v1186, 0.5
  %v1191 = vtanh.pop %v1190
  %v1192 = vmul.f32 %v1191, 0.5
  %v1193 = vadd.f32 %v1192, 0.5
  %v1194 = vmul.f32 %v1187, 0.5
  %v1195 = vtanh.pop %v1194
  %v1196 = vmul.f32 %v1195, 0.5
  %v1197 = vadd.f32 %v1196, 0.5
  %v1198 = vtanh.pop %v1188
  %v1199 = vmul.f32 %v1189, 0.5
  %v1200 = vtanh.pop %v1199
  %v1201 = vmul.f32 %v1200, 0.5
  %v1202 = vadd.f32 %v1201, 0.5
  %v1203 = vmul.f32 %v1197, %v1093
  %v1204 = vmul.f32 %v1193, %v1198
  %v1205 = vadd.f32 %v1203, %v1204
  %v1206 = vtanh.pop %v1205
  %v1207 = vmul.f32 %v1202, %v1206
  %s1208 = smul.u32 5, 4
  %s1209 = smul.addr %s1208, 8
  %s1210 = scalar_lea.vmem [#allocation2], %s1209
  %v1211 = vld [vmem:[%s1210] sm:$0xff]
  %v1212 = vld [vmem:[%s1210 + $0x8] sm:$0xff]
  %v1213 = vld [vmem:[%s1210 + $0x10] sm:$0xff]
  %v1214 = vld [vmem:[%s1210 + $0x18] sm:$0xff]
  %v1215 = vpack.c.bf16 %v1207, %v1207
  %1216 = vmatprep.subr.bf16.mxu0 %v593
  %1217 = vmatpush1.bf16.msra.mxu0 %v592
  %1218 = vmatprep.subr.bf16.mxu0 %v597
  %1219 = vmatpush1.bf16.msra.mxu0 %v596
  %1220 = vmatprep.subr.bf16.mxu0 %v601
  %1221 = vmatpush1.bf16.msra.mxu0 %v600
  %1222 = vmatprep.subr.bf16.mxu0 %v605
  %1223 = vmatpush1.bf16.msra.mxu0 %v604
  %1224 = vmatprep.subr.bf16.mxu0 %v609
  %1225 = vmatpush1.bf16.msra.mxu0 %v608
  %1226 = vmatprep.subr.bf16.mxu0 %v613
  %1227 = vmatpush1.bf16.msra.mxu0 %v612
  %1228 = vmatprep.subr.bf16.mxu0 %v617
  %1229 = vmatpush1.bf16.msra.mxu0 %v616
  %1230 = vmatprep.subr.bf16.mxu0 %v621
  %1231 = vmatpush1.bf16.msra.mxu0 %v620
  %1232 = vmatprep.subr.bf16.mxu0 0
  %1233 = vmatpush1.bf16.msra.mxu0 0
  %1234 = vmatprep.subr.bf16.mxu0 0
  %1235 = vmatpush1.bf16.msra.mxu0 0
  %1236 = vmatprep.subr.bf16.mxu0 0
  %1237 = vmatpush1.bf16.msra.mxu0 0
  %1238 = vmatprep.subr.bf16.mxu0 0
  %1239 = vmatpush1.bf16.msra.mxu0 0
  %1240 = vmatprep.subr.bf16.mxu0 0
  %1241 = vmatpush1.bf16.msra.mxu0 0
  %1242 = vmatprep.subr.bf16.mxu0 0
  %1243 = vmatpush1.bf16.msra.mxu0 0
  %1244 = vmatprep.subr.bf16.mxu0 0
  %1245 = vmatpush1.bf16.msra.mxu0 0
  %1246 = vmatprep.subr.bf16.mxu0 0
  %1247 = vmatpush1.bf16.msra.mxu0 0
  %1248 = vmatprep.mubr.bf16.mxu0 0
  %1249 = vmatmul.mubr.bf16.gmra.mrb[0].mxu0 %v1215
  %v1250 = vpop.f32.mrb[0].mxu0
  %v1251 = vadd.f32 0.0, %v1250
  %v1252 = vpop.f32.mrb[0].mxu0
  %v1253 = vadd.f32 0.0, %v1252
  %v1254 = vpop.f32.mrb[0].mxu0
  %v1255 = vpop.f32.mrb[0].mxu0
  %1256 = vdwg.mxu0
  %1257 = vmatprep.subr.bf16.mxu0 %v595
  %1258 = vmatpush1.bf16.msra.mxu0 %v594
  %1259 = vmatprep.subr.bf16.mxu0 %v599
  %1260 = vmatpush1.bf16.msra.mxu0 %v598
  %1261 = vmatprep.subr.bf16.mxu0 %v603
  %1262 = vmatpush1.bf16.msra.mxu0 %v602
  %1263 = vmatprep.subr.bf16.mxu0 %v607
  %1264 = vmatpush1.bf16.msra.mxu0 %v606
  %1265 = vmatprep.subr.bf16.mxu0 %v611
  %1266 = vmatpush1.bf16.msra.mxu0 %v610
  %1267 = vmatprep.subr.bf16.mxu0 %v615
  %1268 = vmatpush1.bf16.msra.mxu0 %v614
  %1269 = vmatprep.subr.bf16.mxu0 %v619
  %1270 = vmatpush1.bf16.msra.mxu0 %v618
  %1271 = vmatprep.subr.bf16.mxu0 %v623
  %1272 = vmatpush1.bf16.msra.mxu0 %v622
  %1273 = vmatprep.subr.bf16.mxu0 0
  %1274 = vmatpush1.bf16.msra.mxu0 0
  %1275 = vmatprep.subr.bf16.mxu0 0
  %1276 = vmatpush1.bf16.msra.mxu0 0
  %1277 = vmatprep.subr.bf16.mxu0 0
  %1278 = vmatpush1.bf16.msra.mxu0 0
  %1279 = vmatprep.subr.bf16.mxu0 0
  %1280 = vmatpush1.bf16.msra.mxu0 0
  %1281 = vmatprep.subr.bf16.mxu0 0
  %1282 = vmatpush1.bf16.msra.mxu0 0
  %1283 = vmatprep.subr.bf16.mxu0 0
  %1284 = vmatpush1.bf16.msra.mxu0 0
  %1285 = vmatprep.subr.bf16.mxu0 0
  %1286 = vmatpush1.bf16.msra.mxu0 0
  %1287 = vmatprep.subr.bf16.mxu0 0
  %1288 = vmatpush1.bf16.msra.mxu0 0
  %1289 = vmatprep.mubr.bf16.mxu0 0
  %1290 = vmatmul.mubr.bf16.gmra.mrb[0].mxu0 %v1215
  %v1291 = vpop.f32.mrb[0].mxu0
  %v1292 = vadd.f32 0.0, %v1291
  %v1293 = vpop.f32.mrb[0].mxu0
  %v1294 = vadd.f32 0.0, %v1293
  %v1295 = vpop.f32.mrb[0].mxu0
  %v1296 = vpop.f32.mrb[0].mxu0
  %1297 = vdwg.mxu0
  %v1298 = vadd.f32 %v1211, %v1251
  %v1299 = vadd.f32 %v1212, %v1253
  %v1300 = vadd.f32 %v1213, %v1292
  %v1301 = vadd.f32 %v1214, %v1294
  %v1302 = vmul.f32 %v1298, 0.5
  %v1303 = vtanh.pop %v1302
  %v1304 = vmul.f32 %v1303, 0.5
  %v1305 = vadd.f32 %v1304, 0.5
  %v1306 = vmul.f32 %v1299, 0.5
  %v1307 = vtanh.pop %v1306
  %v1308 = vmul.f32 %v1307, 0.5
  %v1309 = vadd.f32 %v1308, 0.5
  %v1310 = vtanh.pop %v1300
  %v1311 = vmul.f32 %v1301, 0.5
  %v1312 = vtanh.pop %v1311
  %v1313 = vmul.f32 %v1312, 0.5
  %v1314 = vadd.f32 %v1313, 0.5
  %v1315 = vmul.f32 %v1309, %v1205
  %v1316 = vmul.f32 %v1305, %v1310
  %v1317 = vadd.f32 %v1315, %v1316
  %v1318 = vtanh.pop %v1317
  %v1319 = vmul.f32 %v1314, %v1318
  %s1320 = smul.u32 6, 4
  %s1321 = smul.addr %s1320, 8
  %s1322 = scalar_lea.vmem [#allocation2], %s1321
  %v1323 = vld [vmem:[%s1322] sm:$0xff]
  %v1324 = vld [vmem:[%s1322 + $0x8] sm:$0xff]
  %v1325 = vld [vmem:[%s1322 + $0x10] sm:$0xff]
  %v1326 = vld [vmem:[%s1322 + $0x18] sm:$0xff]
  %v1327 = vpack.c.bf16 %v1319, %v1319
  %1328 = vmatprep.subr.bf16.mxu0 %v593
  %1329 = vmatpush1.bf16.msra.mxu0 %v592
  %1330 = vmatprep.subr.bf16.mxu0 %v597
  %1331 = vmatpush1.bf16.msra.mxu0 %v596
  %1332 = vmatprep.subr.bf16.mxu0 %v601
  %1333 = vmatpush1.bf16.msra.mxu0 %v600
  %1334 = vmatprep.subr.bf16.mxu0 %v605
  %1335 = vmatpush1.bf16.msra.mxu0 %v604
  %1336 = vmatprep.subr.bf16.mxu0 %v609
  %1337 = vmatpush1.bf16.msra.mxu0 %v608
  %1338 = vmatprep.subr.bf16.mxu0 %v613
  %1339 = vmatpush1.bf16.msra.mxu0 %v612
  %1340 = vmatprep.subr.bf16.mxu0 %v617
  %1341 = vmatpush1.bf16.msra.mxu0 %v616
  %1342 = vmatprep.subr.bf16.mxu0 %v621
  %1343 = vmatpush1.bf16.msra.mxu0 %v620
  %1344 = vmatprep.subr.bf16.mxu0 0
  %1345 = vmatpush1.bf16.msra.mxu0 0
  %1346 = vmatprep.subr.bf16.mxu0 0
  %1347 = vmatpush1.bf16.msra.mxu0 0
  %1348 = vmatprep.subr.bf16.mxu0 0
  %1349 = vmatpush1.bf16.msra.mxu0 0
  %1350 = vmatprep.subr.bf16.mxu0 0
  %1351 = vmatpush1.bf16.msra.mxu0 0
  %1352 = vmatprep.subr.bf16.mxu0 0
  %1353 = vmatpush1.bf16.msra.mxu0 0
  %1354 = vmatprep.subr.bf16.mxu0 0
  %1355 = vmatpush1.bf16.msra.mxu0 0
  %1356 = vmatprep.subr.bf16.mxu0 0
  %1357 = vmatpush1.bf16.msra.mxu0 0
  %1358 = vmatprep.subr.bf16.mxu0 0
  %1359 = vmatpush1.bf16.msra.mxu0 0
  %1360 = vmatprep.mubr.bf16.mxu0 0
  %1361 = vmatmul.mubr.bf16.gmra.mrb[0].mxu0 %v1327
  %v1362 = vpop.f32.mrb[0].mxu0
  %v1363 = vadd.f32 0.0, %v1362
  %v1364 = vpop.f32.mrb[0].mxu0
  %v1365 = vadd.f32 0.0, %v1364
  %v1366 = vpop.f32.mrb[0].mxu0
  %v1367 = vpop.f32.mrb[0].mxu0
  %1368 = vdwg.mxu0
  %1369 = vmatprep.subr.bf16.mxu0 %v595
  %1370 = vmatpush1.bf16.msra.mxu0 %v594
  %1371 = vmatprep.subr.bf16.mxu0 %v599
  %1372 = vmatpush1.bf16.msra.mxu0 %v598
  %1373 = vmatprep.subr.bf16.mxu0 %v603
  %1374 = vmatpush1.bf16.msra.mxu0 %v602
  %1375 = vmatprep.subr.bf16.mxu0 %v607
  %1376 = vmatpush1.bf16.msra.mxu0 %v606
  %1377 = vmatprep.subr.bf16.mxu0 %v611
  %1378 = vmatpush1.bf16.msra.mxu0 %v610
  %1379 = vmatprep.subr.bf16.mxu0 %v615
  %1380 = vmatpush1.bf16.msra.mxu0 %v614
  %1381 = vmatprep.subr.bf16.mxu0 %v619
  %1382 = vmatpush1.bf16.msra.mxu0 %v618
  %1383 = vmatprep.subr.bf16.mxu0 %v623
  %1384 = vmatpush1.bf16.msra.mxu0 %v622
  %1385 = vmatprep.subr.bf16.mxu0 0
  %1386 = vmatpush1.bf16.msra.mxu0 0
  %1387 = vmatprep.subr.bf16.mxu0 0
  %1388 = vmatpush1.bf16.msra.mxu0 0
  %1389 = vmatprep.subr.bf16.mxu0 0
  %1390 = vmatpush1.bf16.msra.mxu0 0
  %1391 = vmatprep.subr.bf16.mxu0 0
  %1392 = vmatpush1.bf16.msra.mxu0 0
  %1393 = vmatprep.subr.bf16.mxu0 0
  %1394 = vmatpush1.bf16.msra.mxu0 0
  %1395 = vmatprep.subr.bf16.mxu0 0
  %1396 = vmatpush1.bf16.msra.mxu0 0
  %1397 = vmatprep.subr.bf16.mxu0 0
  %1398 = vmatpush1.bf16.msra.mxu0 0
  %1399 = vmatprep.subr.bf16.mxu0 0
  %1400 = vmatpush1.bf16.msra.mxu0 0
  %1401 = vmatprep.mubr.bf16.mxu0 0
  %1402 = vmatmul.mubr.bf16.gmra.mrb[0].mxu0 %v1327
  %v1403 = vpop.f32.mrb[0].mxu0
  %v1404 = vadd.f32 0.0, %v1403
  %v1405 = vpop.f32.mrb[0].mxu0
  %v1406 = vadd.f32 0.0, %v1405
  %v1407 = vpop.f32.mrb[0].mxu0
  %v1408 = vpop.f32.mrb[0].mxu0
  %1409 = vdwg.mxu0
  %v1410 = vadd.f32 %v1323, %v1363
  %v1411 = vadd.f32 %v1324, %v1365
  %v1412 = vadd.f32 %v1325, %v1404
  %v1413 = vadd.f32 %v1326, %v1406
  %v1414 = vmul.f32 %v1410, 0.5
  %v1415 = vtanh.pop %v1414
  %v1416 = vmul.f32 %v1415, 0.5
  %v1417 = vadd.f32 %v1416, 0.5
  %v1418 = vmul.f32 %v1411, 0.5
  %v1419 = vtanh.pop %v1418
  %v1420 = vmul.f32 %v1419, 0.5
  %v1421 = vadd.f32 %v1420, 0.5
  %v1422 = vtanh.pop %v1412
  %v1423 = vmul.f32 %v1413, 0.5
  %v1424 = vtanh.pop %v1423
  %v1425 = vmul.f32 %v1424, 0.5
  %v1426 = vadd.f32 %v1425, 0.5
  %v1427 = vmul.f32 %v1421, %v1317
  %v1428 = vmul.f32 %v1417, %v1422
  %v1429 = vadd.f32 %v1427, %v1428
  %v1430 = vtanh.pop %v1429
  %v1431 = vmul.f32 %v1426, %v1430
  %s1432 = smul.u32 7, 4
  %s1433 = smul.addr %s1432, 8
  %s1434 = scalar_lea.vmem [#allocation2], %s1433
  %v1435 = vld [vmem:[%s1434] sm:$0xff]
  %v1436 = vld [vmem:[%s1434 + $0x8] sm:$0xff]
  %v1437 = vld [vmem:[%s1434 + $0x10] sm:$0xff]
  %v1438 = vld [vmem:[%s1434 + $0x18] sm:$0xff]
  %v1439 = vpack.c.bf16 %v1431, %v1431
  %1440 = vmatprep.subr.bf16.mxu0 %v593
  %1441 = vmatpush1.bf16.msra.mxu0 %v592
  %1442 = vmatprep.subr.bf16.mxu0 %v597
  %1443 = vmatpush1.bf16.msra.mxu0 %v596
  %1444 = vmatprep.subr.bf16.mxu0 %v601
  %1445 = vmatpush1.bf16.msra.mxu0 %v600
  %1446 = vmatprep.subr.bf16.mxu0 %v605
  %1447 = vmatpush1.bf16.msra.mxu0 %v604
  %1448 = vmatprep.subr.bf16.mxu0 %v609
  %1449 = vmatpush1.bf16.msra.mxu0 %v608
  %1450 = vmatprep.subr.bf16.mxu0 %v613
  %1451 = vmatpush1.bf16.msra.mxu0 %v612
  %1452 = vmatprep.subr.bf16.mxu0 %v617
  %1453 = vmatpush1.bf16.msra.mxu0 %v616
  %1454 = vmatprep.subr.bf16.mxu0 %v621
  %1455 = vmatpush1.bf16.msra.mxu0 %v620
  %1456 = vmatprep.subr.bf16.mxu0 0
  %1457 = vmatpush1.bf16.msra.mxu0 0
  %1458 = vmatprep.subr.bf16.mxu0 0
  %1459 = vmatpush1.bf16.msra.mxu0 0
  %1460 = vmatprep.subr.bf16.mxu0 0
  %1461 = vmatpush1.bf16.msra.mxu0 0
  %1462 = vmatprep.subr.bf16.mxu0 0
  %1463 = vmatpush1.bf16.msra.mxu0 0
  %1464 = vmatprep.subr.bf16.mxu0 0
  %1465 = vmatpush1.bf16.msra.mxu0 0
  %1466 = vmatprep.subr.bf16.mxu0 0
  %1467 = vmatpush1.bf16.msra.mxu0 0
  %1468 = vmatprep.subr.bf16.mxu0 0
  %1469 = vmatpush1.bf16.msra.mxu0 0
  %1470 = vmatprep.subr.bf16.mxu0 0
  %1471 = vmatpush1.bf16.msra.mxu0 0
  %1472 = vmatprep.mubr.bf16.mxu0 0
  %1473 = vmatmul.mubr.bf16.gmra.mrb[0].mxu0 %v1439
  %v1474 = vpop.f32.mrb[0].mxu0
  %v1475 = vadd.f32 0.0, %v1474
  %v1476 = vpop.f32.mrb[0].mxu0
  %v1477 = vadd.f32 0.0, %v1476
  %v1478 = vpop.f32.mrb[0].mxu0
  %v1479 = vpop.f32.mrb[0].mxu0
  %1480 = vdwg.mxu0
  %1481 = vmatprep.subr.bf16.mxu0 %v595
  %1482 = vmatpush1.bf16.msra.mxu0 %v594
  %1483 = vmatprep.subr.bf16.mxu0 %v599
  %1484 = vmatpush1.bf16.msra.mxu0 %v598
  %1485 = vmatprep.subr.bf16.mxu0 %v603
  %1486 = vmatpush1.bf16.msra.mxu0 %v602
  %1487 = vmatprep.subr.bf16.mxu0 %v607
  %1488 = vmatpush1.bf16.msra.mxu0 %v606
  %1489 = vmatprep.subr.bf16.mxu0 %v611
  %1490 = vmatpush1.bf16.msra.mxu0 %v610
  %1491 = vmatprep.subr.bf16.mxu0 %v615
  %1492 = vmatpush1.bf16.msra.mxu0 %v614
  %1493 = vmatprep.subr.bf16.mxu0 %v619
  %1494 = vmatpush1.bf16.msra.mxu0 %v618
  %1495 = vmatprep.subr.bf16.mxu0 %v623
  %1496 = vmatpush1.bf16.msra.mxu0 %v622
  %1497 = vmatprep.subr.bf16.mxu0 0
  %1498 = vmatpush1.bf16.msra.mxu0 0
  %1499 = vmatprep.subr.bf16.mxu0 0
  %1500 = vmatpush1.bf16.msra.mxu0 0
  %1501 = vmatprep.subr.bf16.mxu0 0
  %1502 = vmatpush1.bf16.msra.mxu0 0
  %1503 = vmatprep.subr.bf16.mxu0 0
  %1504 = vmatpush1.bf16.msra.mxu0 0
  %1505 = vmatprep.subr.bf16.mxu0 0
  %1506 = vmatpush1.bf16.msra.mxu0 0
  %1507 = vmatprep.subr.bf16.mxu0 0
  %1508 = vmatpush1.bf16.msra.mxu0 0
  %1509 = vmatprep.subr.bf16.mxu0 0
  %1510 = vmatpush1.bf16.msra.mxu0 0
  %1511 = vmatprep.subr.bf16.mxu0 0
  %1512 = vmatpush1.bf16.msra.mxu0 0
  %1513 = vmatprep.mubr.bf16.mxu0 0
  %1514 = vmatmul.mubr.bf16.gmra.mrb[0].mxu0 %v1439
  %v1515 = vpop.f32.mrb[0].mxu0
  %v1516 = vadd.f32 0.0, %v1515
  %v1517 = vpop.f32.mrb[0].mxu0
  %v1518 = vadd.f32 0.0, %v1517
  %v1519 = vpop.f32.mrb[0].mxu0
  %v1520 = vpop.f32.mrb[0].mxu0
  %1521 = vdwg.mxu0
  %v1522 = vadd.f32 %v1435, %v1475
  %v1523 = vadd.f32 %v1436, %v1477
  %v1524 = vadd.f32 %v1437, %v1516
  %v1525 = vadd.f32 %v1438, %v1518
  %v1526 = vmul.f32 %v1522, 0.5
  %v1527 = vtanh.pop %v1526
  %v1528 = vmul.f32 %v1527, 0.5
  %v1529 = vadd.f32 %v1528, 0.5
  %v1530 = vmul.f32 %v1523, 0.5
  %v1531 = vtanh.pop %v1530
  %v1532 = vmul.f32 %v1531, 0.5
  %v1533 = vadd.f32 %v1532, 0.5
  %v1534 = vtanh.pop %v1524
  %v1535 = vmul.f32 %v1525, 0.5
  %v1536 = vtanh.pop %v1535
  %v1537 = vmul.f32 %v1536, 0.5
  %v1538 = vadd.f32 %v1537, 0.5
  %v1539 = vmul.f32 %v1533, %v1429
  %v1540 = vmul.f32 %v1529, %v1534
  %v1541 = vadd.f32 %v1539, %v1540
  %v1542 = vtanh.pop %v1541
  %v1543 = vmul.f32 %v1538, %v1542
  %1544 = vst [vmem:[#allocation3] sm:$0xff] %v1543
  %1545 = vst [vmem:[#allocation4] sm:$0xff] %v1541
  // Predicated region
  $region30: #{lstm_forward.1} parent=0 // pred_check
    %p1546 = pneg %p24
  $region31: #{lstm_forward.1} parent=0 // pred_check_branch
    %1548 = sbr.rel (%p1546) target = $region33
  $region32: #{lstm_forward.1} parent=0 // pred_region
    %v1549 = vpack.c.bf16 %v1543, %v1543
    %v1550 = vld [vmem:[%s4] sm:$0xf]
    %v1551 = vld [vmem:[%s4 + $0x4] sm:$0xf]
    %v1552 = vld [vmem:[%s4 + $0x8] sm:$0xf]
    %v1553 = vld [vmem:[%s4 + $0xc] sm:$0xf]
    %v1554 = vld [vmem:[%s4 + $0x10] sm:$0xf]
    %v1555 = vld [vmem:[%s4 + $0x14] sm:$0xf]
    %v1556 = vld [vmem:[%s4 + $0x18] sm:$0xf]
    %v1557 = vld [vmem:[%s4 + $0x1c] sm:$0xf]
    %v1558 = vld [vmem:[%s4 + $0x20] sm:$0xf]
    %v1559 = vld [vmem:[%s4 + $0x24] sm:$0xf]
    %v1560 = vld [vmem:[%s4 + $0x28] sm:$0xf]
    %v1561 = vld [vmem:[%s4 + $0x2c] sm:$0xf]
    %v1562 = vld [vmem:[%s4 + $0x30] sm:$0xf]
    %v1563 = vld [vmem:[%s4 + $0x34] sm:$0xf]
    %v1564 = vld [vmem:[%s4 + $0x38] sm:$0xf]
    %v1565 = vld [vmem:[%s4 + $0x3c] sm:$0xf]
    %v1566 = vld [vmem:[%s5] sm:$0x1]
    %v1568 = vlaneseq
    %v1569 = vshrl.u32 %v1568, 7
    %v1570 = vsub.s32 0, %v1569
    %v1571 = vrot.slane %v1566, %v1570
    %v1589 = vunpack.c.l.b16 %v1550
    %v1590 = vunpack.c.l.b16 %v1551
    %v1591 = vunpack.c.l.b16 %v1552
    %v1592 = vunpack.c.l.b16 %v1553
    %v1593 = vunpack.c.l.b16 %v1554
    %v1594 = vunpack.c.l.b16 %v1555
    %v1595 = vunpack.c.l.b16 %v1556
    %v1596 = vunpack.c.l.b16 %v1557
    %v1597 = vunpack.c.l.b16 %v1558
    %v1598 = vunpack.c.l.b16 %v1559
    %v1599 = vunpack.c.l.b16 %v1560
    %v1600 = vunpack.c.l.b16 %v1561
    %v1601 = vunpack.c.l.b16 %v1562
    %v1602 = vunpack.c.l.b16 %v1563
    %v1603 = vunpack.c.l.b16 %v1564
    %v1604 = vunpack.c.l.b16 %v1565
    %v1605 = vpack.c.b16 %v1590, %v1589
    %v1606 = vpack.c.b16 %v1592, %v1591
    %v1607 = vpack.c.b16 %v1594, %v1593
    %v1608 = vpack.c.b16 %v1596, %v1595
    %v1609 = vpack.c.b16 %v1598, %v1597
    %v1610 = vpack.c.b16 %v1600, %v1599
    %v1611 = vpack.c.b16 %v1602, %v1601
    %v1612 = vpack.c.b16 %v1604, %v1603
    %1621 = vmatprep.subr.bf16.mxu0 0
    %1622 = vmatpush1.bf16.msra.mxu0 %v1605
    %1623 = vmatprep.subr.bf16.mxu0 0
    %1624 = vmatpush1.bf16.msra.mxu0 %v1606
    %1625 = vmatprep.subr.bf16.mxu0 0
    %1626 = vmatpush1.bf16.msra.mxu0 %v1607
    %1627 = vmatprep.subr.bf16.mxu0 0
    %1628 = vmatpush1.bf16.msra.mxu0 %v1608
    %1629 = vmatprep.subr.bf16.mxu0 0
    %1630 = vmatpush1.bf16.msra.mxu0 %v1609
    %1631 = vmatprep.subr.bf16.mxu0 0
    %1632 = vmatpush1.bf16.msra.mxu0 %v1610
    %1633 = vmatprep.subr.bf16.mxu0 0
    %1634 = vmatpush1.bf16.msra.mxu0 %v1611
    %1635 = vmatprep.subr.bf16.mxu0 0
    %1636 = vmatpush1.bf16.msra.mxu0 %v1612
    %1637 = vmatprep.subr.bf16.mxu0 0
    %1638 = vmatpush1.bf16.msra.mxu0 0
    %1639 = vmatprep.subr.bf16.mxu0 0
    %1640 = vmatpush1.bf16.msra.mxu0 0
    %1641 = vmatprep.subr.bf16.mxu0 0
    %1642 = vmatpush1.bf16.msra.mxu0 0
    %1643 = vmatprep.subr.bf16.mxu0 0
    %1644 = vmatpush1.bf16.msra.mxu0 0
    %1645 = vmatprep.subr.bf16.mxu0 0
    %1646 = vmatpush1.bf16.msra.mxu0 0
    %1647 = vmatprep.subr.bf16.mxu0 0
    %1648 = vmatpush1.bf16.msra.mxu0 0
    %1649 = vmatprep.subr.bf16.mxu0 0
    %1650 = vmatpush1.bf16.msra.mxu0 0
    %1651 = vmatprep.subr.bf16.mxu0 0
    %1652 = vmatpush1.bf16.msra.mxu0 0
    %1653 = vmatprep.mubr.bf16.mxu0 0
    %1654 = vmatmul.mubr.bf16.gmra.mrb[0].mxu0 %v1549
    %v1655 = vpop.f32.mrb[0].mxu0
    %v1656 = vadd.f32 %v1571, %v1655
    %v1657 = vpop.f32.mrb[0].mxu0
    %v1658 = vpop.f32.mrb[0].mxu0
    %v1659 = vpop.f32.mrb[0].mxu0
    %1660 = vdwg.mxu0
    %1661 = vst [vmem:[%s6] sm:$0xff] %v1656
  $region33: #{lstm_forward.1} parent=0 // pred_fallthru
    _
  // Predicated region
  $region34: #{lstm_forward.1} parent=0 // pred_check
    _
  $region35: #{lstm_forward.1} parent=0 // pred_check_branch
    %1663 = sbr.rel (0) target = $region37
  $region36: #{lstm_forward.1} parent=0 // pred_region
    _
  $region37: #{lstm_forward.1} parent=0 // pred_fallthru
    _
  // Predicated region
  $region38: #{lstm_forward.1} parent=0 // pred_check
    _
  $region39: #{lstm_forward.1} parent=0 // pred_check_branch
    %1665 = sbr.rel (0) target = $region41
  $region40: #{lstm_forward.1} parent=0 // pred_region
    _
  $region41: #{lstm_forward.1} parent=0 // pred_fallthru
    _

</llo_original>
